<compile_context>
chip_gen: v5e
topology: v5e:2x2
jax: 0.10.0
libtpu: 0.0.40
codegen_flags: <defaults>
</compile_context>

<pallas_src>
import functools
import math

import numpy as np
import jax
import jax.numpy as jnp
from jax.experimental import pallas as pl
from jax.experimental.pallas import tpu as pltpu


# ----------------------------------------------------------------------------
# Host-side (numpy, trace time) filter & banded-operator construction
# ----------------------------------------------------------------------------
def kaiser_sinc_filter1d(cutoff, half_width, kernel_size):
    """Matches torch_jaekwon / BigVGAN kaiser_sinc_filter1d (returns [K])."""
    even = kernel_size % 2 == 0
    half_size = kernel_size // 2
    delta_f = 4 * half_width
    A = 2.285 * (half_size - 1) * math.pi * delta_f + 7.95
    if A > 50.0:
        beta = 0.1102 * (A - 8.7)
    elif A >= 21.0:
        beta = 0.5842 * (A - 21.0) ** 0.4 + 0.07886 * (A - 21.0)
    else:
        beta = 0.0
    window = np.kaiser(kernel_size, beta)  # == torch.kaiser_window(periodic=False)
    if even:
        time = np.arange(-half_size, half_size) + 0.5
    else:
        time = np.arange(kernel_size) - half_size
    if cutoff == 0:
        return np.zeros_like(time)
    filt = 2 * cutoff * window * np.sinc(2 * cutoff * time)
    filt = filt / filt.sum()
    return filt


def _round_up(v, m):
    return (v + m - 1) // m * m


def _build_band(j, T, tn, hy, w_up, w_dn, up_ratio, down_ratio):
    """Band operators for output time tile j, built directly from the filter
    taps (no dense [T, ratio*T] operator).

    Returns (Wup [3*tn, ywin], Wdn [ywin, tn], pure).  `pure` is True iff no
    boundary clamping / truncation influenced this tile -- all pure tiles are
    bit-identical by shift invariance of the filters."""
    Ku, Kd = len(w_up), len(w_dn)
    r = up_ratio
    pad_u = Ku // r - 1
    pad_left_u = pad_u * r + (Ku - r) // 2
    pad_left_d = Kd // 2 - int(Kd % 2 == 0)
    Lp = T + 2 * pad_u                       # replicate-padded input length
    Ly = r * T                               # upsampled-signal length
    ywin = r * tn + 2 * hy
    win0 = r * j * tn - hy                   # window start in the upsampled signal
    Wup = np.zeros((3 * tn, ywin), np.float64)
    Wdn = np.zeros((ywin, tn), np.float64)
    pure = True

    # Downsample band: out[j*tn+t] = sum_k w_dn[k] * y[clip(dr*t_g + k - pad_left_d)]
    for t in range(tn):
        t_g = j * tn + t
        if t_g >= T:                         # column lies in the T -> Tp zero padding
            pure = False
            continue
        for k in range(Kd):
            p = down_ratio * t_g + k - pad_left_d
            pc = min(max(p, 0), Ly - 1)      # replicate padding of the upsampled signal
            if pc != p:
                pure = False
            c = pc - win0
            assert 0 <= c < ywin, "halo `hy` too small for the downsample filter"
            Wdn[c, t] += w_dn[k]

    # Upsample band: y[p] = r * sum_{i: k=p+pad_left_u-r*i in [0,Ku)} w_up[k]*x[clip(i-pad_u)]
    for c in range(ywin):
        p = win0 + c
        if p < 0 or p >= Ly:                 # window column outside the signal
            pure = False
            continue
        a = p + pad_left_u - Ku + 1
        i_lo = -((-a) // r)                  # ceil division
        i_hi = (p + pad_left_u) // r
        if i_lo < 0 or i_hi > Lp - 1:
            pure = False
        for i in range(max(i_lo, 0), min(i_hi, Lp - 1) + 1):
            k = p + pad_left_u - r * i
            xi = i - pad_u
            xic = min(max(xi, 0), T - 1)     # replicate padding of x
            if xic != xi:
                pure = False
            rl = xic - (j - 1) * tn          # row within the 3-tile x window
            assert 0 <= rl < 3 * tn, "halo `hy` too small for the upsample filter"
            Wup[rl, c] += r * w_up[k]
    return Wup, Wdn, pure


def build_banded_weights(T, tn, hy, w_up, w_dn, up_ratio, down_ratio):
    """Deduplicated per-time-tile bands.

    Returns (Wup [nb, 3*tn, ywin], Wdn [nb, ywin, tn], band_of [Tb] int32) with
    nb <= 5: all interior tiles share one band; only boundary tiles get their own."""
    Tp = _round_up(T, tn)
    Tb = Tp // tn
    build = functools.partial(_build_band, T=T, tn=tn, hy=hy, w_up=w_up,
                              w_dn=w_dn, up_ratio=up_ratio, down_ratio=down_ratio)
    bands_up, bands_dn = [], []
    band_of = np.zeros((Tb,), np.int32)

    def add(Wu, Wd):
        bands_up.append(Wu)
        bands_dn.append(Wd)
        return len(bands_up) - 1

    # Tiles that may interact with the signal boundaries / zero padding.
    candidates = sorted({j for j in (0, 1, Tb - 2, Tb - 1) if 0 <= j < Tb})
    interior = [j for j in range(Tb) if j not in candidates]

    pure_idx = None
    if interior:
        # Interior bands are shift-invariant -> one shared band.  Verify at the
        # first and last interior tile (boundary interaction is monotone in j).
        Wu0, Wd0, p0 = build(interior[0])
        Wu1, Wd1, p1 = build(interior[-1])
        assert p0 and p1 and np.array_equal(Wu0, Wu1) and np.array_equal(Wd0, Wd1), \
            "interior tiles are not shift-invariant; increase tn or decrease hy"
        pure_idx = add(Wu0, Wd0)
        for j in interior:
            band_of[j] = pure_idx
    for j in candidates:
        Wu, Wd, pure = build(j)
        if pure and pure_idx is not None:
            assert np.array_equal(Wu, bands_up[pure_idx])   # shift-invariance check
            band_of[j] = pure_idx
        elif pure:
            pure_idx = add(Wu, Wd)
            band_of[j] = pure_idx
        else:
            band_of[j] = add(Wu, Wd)
    return np.stack(bands_up), np.stack(bands_dn), band_of


# ----------------------------------------------------------------------------
# Pallas kernel: one (time-tile, row-tile) grid step
# ----------------------------------------------------------------------------
def _alias_free_kernel(band_ref, xl_ref, xc_ref, xr_ref, wu_ref, wd_ref, ab_ref,
                       o_ref, *, compute_dtype):
    del band_ref                                  # consumed by the index maps only
    tn = xc_ref.shape[1]
    wu = wu_ref[0]                                # [3*tn, ywin] resident band

    # Banded depthwise transposed conv (upsample): three MXU matmuls, f32 acc.
    y = jnp.dot(xl_ref[...].astype(compute_dtype), wu[:tn],
                preferred_element_type=jnp.float32)
    y = y + jnp.dot(xc_ref[...].astype(compute_dtype), wu[tn:2 * tn],
                    preferred_element_type=jnp.float32)
    y = y + jnp.dot(xr_ref[...].astype(compute_dtype), wu[2 * tn:],
                    preferred_element_type=jnp.float32)

    # Snake activation (f32): y + sin(alpha*y)^2 * inv_alpha, per-row alpha with
    # inv_alpha = 1/(alpha + 1e-9) precomputed on host.
    a = ab_ref[:, 0:1]                            # [tm, 1] f32
    inv_a = ab_ref[:, 1:2]                        # [tm, 1] f32
    s = jnp.sin(a * y)
    act = (y + (s * s) * inv_a).astype(compute_dtype)

    # Banded low-pass conv (downsample) on the MXU.
    o_ref[...] = jnp.dot(act, wd_ref[0],
                         preferred_element_type=jnp.float32).astype(o_ref.dtype)


# ----------------------------------------------------------------------------
# Wrapper
# ----------------------------------------------------------------------------
def alias_free_1d(x, alpha, *, up_ratio=2, down_ratio=2, up_kernel_size=12,
                  down_kernel_size=12, compute_dtype=jnp.bfloat16, out_dtype=None,
                  tn=256, hy=64, tm_max=256):
    """AliasFree1d forward.  x: [B, C, T] float; alpha: [C] Snake alpha."""
    assert x.ndim == 3
    assert up_ratio == down_ratio == 2, "band geometry derived for the default ratio=2"
    B, C, T = x.shape
    R = B * C
    assert alpha.shape == (C,)
    assert tn % 128 == 0 and hy % 64 == 0    # lane-dense ywin = ratio*tn + 2*hy
    ratio = up_ratio
    out_dtype = x.dtype if out_dtype is None else out_dtype

    # ---- static filter / banded-operator construction (numpy, trace time) ----
    w_up = kaiser_sinc_filter1d(0.5 / up_ratio, 0.6 / up_ratio, up_kernel_size)
    w_dn = kaiser_sinc_filter1d(0.5 / down_ratio, 0.6 / down_ratio, down_kernel_size)
    Tp = _round_up(T, tn)
    Tb = Tp // tn
    ywin = ratio * tn + 2 * hy
    Wup_b, Wdn_b, band_of = build_banded_weights(T, tn, hy, w_up, w_dn,
                                                 up_ratio, down_ratio)
    nb = Wup_b.shape[0]

    tm = min(tm_max, _round_up(R, 8))
    R_pad = _round_up(R, tm)
    Rt = R_pad // tm

    # ---- device operands ----
    x2 = x.reshape(R, T)
    if (R_pad, Tp) != (R, T):
        # Zero-pad only when needed; band rows/cols beyond T are exactly zero,
        # so the padded values never contribute.
        x2 = jnp.pad(x2, ((0, R_pad - R), (0, Tp - T)))
    wup_c = jnp.asarray(Wup_b, compute_dtype)           # [nb, 3*tn, ywin]
    wdn_c = jnp.asarray(Wdn_b, compute_dtype)           # [nb, ywin, tn]
    a_row = jnp.tile(alpha.astype(jnp.float32), B)      # per-row Snake alpha [R]
    ab = jnp.stack([a_row, 1.0 / (a_row + 1e-9)], axis=1)   # [R, 2]: alpha | inv_alpha
    if R_pad != R:
        ab = jnp.pad(ab, ((0, R_pad - R), (0, 0)), constant_values=1.0)
    band_idx = jnp.asarray(band_of, jnp.int32)           # [Tb] scalar-prefetched table

    # Time-outer grid: the weight-band block index is constant across the inner
    # (row) axis and across interior time tiles -> bands stay VMEM-resident.
    # (On v7x megacore, if Tb == 1 with many row tiles the leading parallel axis
    #  is degenerate; acceptable for the short-T case, rows dominate otherwise.)
    grid = (Tb, Rt)

    x_size = np.dtype(x.dtype).itemsize
    w_size = np.dtype(compute_dtype).itemsize
    cost = pl.CostEstimate(
        flops=8 * R_pad * Tp * ywin,
        transcendentals=R_pad * Tb * ywin,
        bytes_accessed=(3 * R_pad * Tp * x_size
                        + nb * 4 * tn * ywin * w_size
                        + R_pad * Tp * np.dtype(out_dtype).itemsize))

    kernel = functools.partial(_alias_free_kernel, compute_dtype=compute_dtype)

    out = pl.pallas_call(
        kernel,
        out_shape=jax.ShapeDtypeStruct((R_pad, Tp), out_dtype),
        grid_spec=pltpu.PrefetchScalarGridSpec(
            num_scalar_prefetch=1,
            grid=grid,
            in_specs=[
                # x tiles j-1 / j / j+1 (clamped at the edges; the corresponding
                # band rows are exactly zero so the duplicate data is harmless).
                pl.BlockSpec((tm, tn), lambda j, i, b: (i, jnp.maximum(j - 1, 0))),
                pl.BlockSpec((tm, tn), lambda j, i, b: (i, j)),
                pl.BlockSpec((tm, tn),
                             lambda j, i, b: (i, jnp.minimum(j + 1, Tb - 1))),
                # Deduplicated weight bands selected via the prefetched table.
                pl.BlockSpec((1, 3 * tn, ywin), lambda j, i, b: (b[j], 0, 0)),
                pl.BlockSpec((1, ywin, tn), lambda j, i, b: (b[j], 0, 0)),
                # Per-row (alpha, 1/(alpha+eps)).
                pl.BlockSpec((tm, 2), lambda j, i, b: (i, 0)),
            ],
            out_specs=pl.BlockSpec((tm, tn), lambda j, i, b: (i, j)),
        ),
        compiler_params=pltpu.CompilerParams(
            dimension_semantics=("parallel", "parallel"),
            vmem_limit_bytes=32 * 1024 * 1024),
        cost_estimate=cost,
    )(band_idx, x2, x2, x2, wup_c, wdn_c, ab)

    return out[:R, :T].reshape(B, C, T)


# ----------------------------------------------------------------------------
# Independent numpy reference (direct PyTorch-semantics loops)
# ----------------------------------------------------------------------------
def ref_forward_np(x, w_up, w_dn, alpha, ratio):
    B, C, T = x.shape
    K = w_up.shape[0]
    pad = K // ratio - 1
    pad_left = pad * ratio + (K - ratio) // 2
    pad_right = pad * ratio + (K - ratio + 1) // 2
    out = np.zeros((B, C, T), np.float64)
    for b in range(B):
        for c in range(C):
            xi = x[b, c]
            xp = np.concatenate([np.full(pad, xi[0]), xi, np.full(pad, xi[-1])])
            ct = np.zeros((xp.shape[0] - 1) * ratio + K)
            for i in range(xp.shape[0]):
                for k in range(K):
                    ct[ratio * i + k] += xp[i] * w_up[k]
            ct *= ratio
            y = ct[pad_left: ct.shape[0] - pad_right]
            a = alpha[c]
            y = y + np.sin(a * y) ** 2 / (a + 1e-9)
            pl_dn, pr_dn = K // 2 - 1, K // 2
            yp = np.concatenate([np.full(pl_dn, y[0]), y, np.full(pr_dn, y[-1])])
            Tout = (yp.shape[0] - K) // ratio + 1
            for t in range(Tout):
                out[b, c, t] = np.sum(w_dn * yp[ratio * t: ratio * t + K])
    return out


# ----------------------------------------------------------------------------
if __name__ == "__main__":
    up_ratio, K = 2, 12
    w = kaiser_sinc_filter1d(0.5 / up_ratio, 0.6 / up_ratio, K)

    # Cases: single time tile, boundary-only tiles, and multi-tile with shared
    # interior bands + clamped neighbor blocks.
    for (B, C, T) in [(2, 4, 16), (2, 4, 300), (2, 4, 1500)]:
        key = jax.random.PRNGKey(0)
        x = jax.random.normal(key, (B, C, T), dtype=jnp.float32)
        # Deterministic per-channel Snake alpha (the injected `activation`).
        alpha = 0.5 + 0.25 * np.arange(C, dtype=np.float64)
        ref = ref_forward_np(np.asarray(x, np.float64), w, w, alpha, up_ratio)

        # f32 path: tight check against the PyTorch-semantics reference.
        out32 = alias_free_1d(x, jnp.asarray(alpha, jnp.float32),
                              compute_dtype=jnp.float32)
        out32 = jax.block_until_ready(out32)
        assert out32.shape == (B, C, T) and out32.dtype == x.dtype
        np.testing.assert_allclose(np.asarray(out32, np.float64), ref,
                                   atol=1e-4, rtol=1e-4)

        # bf16 MXU path (production default) with bf16 writeback.
        outbf = alias_free_1d(x, jnp.asarray(alpha, jnp.float32),
                              compute_dtype=jnp.bfloat16, out_dtype=jnp.bfloat16)
        outbf = jax.block_until_ready(outbf)
        assert outbf.shape == (B, C, T)
        np.testing.assert_allclose(
            np.asarray(outbf.astype(jnp.float32), np.float64), ref,
            atol=1e-1, rtol=1e-1)

    print("KERNEL_OK")
</pallas_src>

<mosaic_0001>
module attributes {stable_mosaic.version = 11 : i64} {
  func.func @_alias_free_kernel(%arg0: i32, %arg1: i32, %arg2: memref<1xi32, #tpu.memory_space<smem>>, %arg3: memref<8x256xf32, #tpu.memory_space<vmem>>, %arg4: memref<8x256xf32, #tpu.memory_space<vmem>>, %arg5: memref<8x256xf32, #tpu.memory_space<vmem>>, %arg6: memref<1x768x640xf32, #tpu.memory_space<vmem>>, %arg7: memref<1x640x256xf32, #tpu.memory_space<vmem>>, %arg8: memref<8x2xf32, #tpu.memory_space<vmem>>, %arg9: memref<8x256xf32, #tpu.memory_space<vmem>>) attributes {dimension_semantics = [#tpu.dimension_semantics<parallel>, #tpu.dimension_semantics<parallel>], iteration_bounds = array<i64: 1, 1>, scalar_prefetch = 1 : i64, scratch_operands = 0 : i64, tpu.core_type = #tpu.core_type<tc>, window_params = [{transform_indices = @transform_0, window_bounds = array<i64: 8, 256>}, {transform_indices = @transform_1, window_bounds = array<i64: 8, 256>}, {transform_indices = @transform_2, window_bounds = array<i64: 8, 256>}, {transform_indices = @transform_3, window_bounds = array<i64: 1, 768, 640>}, {transform_indices = @transform_4, window_bounds = array<i64: 1, 640, 256>}, {transform_indices = @transform_5, window_bounds = array<i64: 8, 2>}, {transform_indices = @transform_6, window_bounds = array<i64: 8, 256>}]} {
    %c0 = arith.constant 0 : index
    %c0_0 = arith.constant 0 : index
    %c0_1 = arith.constant 0 : index
    %0 = vector.load %arg6[%c0, %c0_0, %c0_1] : memref<1x768x640xf32, #tpu.memory_space<vmem>>, vector<1x768x640xf32>
    %1 = vector.shape_cast %0 : vector<1x768x640xf32> to vector<768x640xf32>
    %c0_2 = arith.constant 0 : index
    %c0_3 = arith.constant 0 : index
    %2 = vector.load %arg3[%c0_2, %c0_3] : memref<8x256xf32, #tpu.memory_space<vmem>>, vector<8x256xf32>
    %3 = vector.extract_strided_slice %1 {offsets = [0, 0], sizes = [256, 640], strides = [1, 1]} : vector<768x640xf32> to vector<256x640xf32>
    %cst = arith.constant dense<0.000000e+00> : vector<8x640xf32>
    %4 = tpu.matmul %2, %3, %cst {dimension_numbers = #tpu.dot_dimension_numbers<[1], [0], [0], [1], [0, 0, 1, 1], [], []>} : vector<8x256xf32>, vector<256x640xf32>, vector<8x640xf32> -> vector<8x640xf32>
    %c0_4 = arith.constant 0 : index
    %c0_5 = arith.constant 0 : index
    %5 = vector.load %arg4[%c0_4, %c0_5] : memref<8x256xf32, #tpu.memory_space<vmem>>, vector<8x256xf32>
    %6 = vector.extract_strided_slice %1 {offsets = [256, 0], sizes = [256, 640], strides = [1, 1]} : vector<768x640xf32> to vector<256x640xf32>
    %cst_6 = arith.constant dense<0.000000e+00> : vector<8x640xf32>
    %7 = tpu.matmul %5, %6, %cst_6 {dimension_numbers = #tpu.dot_dimension_numbers<[1], [0], [0], [1], [0, 0, 1, 1], [], []>} : vector<8x256xf32>, vector<256x640xf32>, vector<8x640xf32> -> vector<8x640xf32>
    %8 = arith.addf %4, %7 : vector<8x640xf32>
    %c0_7 = arith.constant 0 : index
    %c0_8 = arith.constant 0 : index
    %9 = vector.load %arg5[%c0_7, %c0_8] : memref<8x256xf32, #tpu.memory_space<vmem>>, vector<8x256xf32>
    %10 = vector.extract_strided_slice %1 {offsets = [512, 0], sizes = [256, 640], strides = [1, 1]} : vector<768x640xf32> to vector<256x640xf32>
    %cst_9 = arith.constant dense<0.000000e+00> : vector<8x640xf32>
    %11 = tpu.matmul %9, %10, %cst_9 {dimension_numbers = #tpu.dot_dimension_numbers<[1], [0], [0], [1], [0, 0, 1, 1], [], []>} : vector<8x256xf32>, vector<256x640xf32>, vector<8x640xf32> -> vector<8x640xf32>
    %12 = arith.addf %8, %11 : vector<8x640xf32>
    %c0_10 = arith.constant 0 : index
    %c0_11 = arith.constant 0 : index
    %13 = vector.load %arg8[%c0_10, %c0_11] : memref<8x2xf32, #tpu.memory_space<vmem>>, vector<8x1xf32>
    %c0_12 = arith.constant 0 : index
    %c1 = arith.constant 1 : index
    %14 = vector.load %arg8[%c0_12, %c1] : memref<8x2xf32, #tpu.memory_space<vmem>>, vector<8x1xf32>
    %15 = vector.broadcast %13 : vector<8x1xf32> to vector<8x640xf32>
    %16 = arith.mulf %15, %12 : vector<8x640xf32>
    %17 = math.sin %16 : vector<8x640xf32>
    %18 = arith.mulf %17, %17 : vector<8x640xf32>
    %19 = vector.broadcast %14 : vector<8x1xf32> to vector<8x640xf32>
    %20 = arith.mulf %18, %19 : vector<8x640xf32>
    %21 = arith.addf %12, %20 : vector<8x640xf32>
    %c0_13 = arith.constant 0 : index
    %c0_14 = arith.constant 0 : index
    %c0_15 = arith.constant 0 : index
    %22 = vector.load %arg7[%c0_13, %c0_14, %c0_15] : memref<1x640x256xf32, #tpu.memory_space<vmem>>, vector<1x640x256xf32>
    %23 = vector.shape_cast %22 : vector<1x640x256xf32> to vector<640x256xf32>
    %cst_16 = arith.constant dense<0.000000e+00> : vector<8x256xf32>
    %24 = tpu.matmul %21, %23, %cst_16 {dimension_numbers = #tpu.dot_dimension_numbers<[1], [0], [0], [1], [0, 0, 1, 1], [], []>} : vector<8x640xf32>, vector<640x256xf32>, vector<8x256xf32> -> vector<8x256xf32>
    %c0_17 = arith.constant 0 : index
    %c0_18 = arith.constant 0 : index
    %25 = vector.load %arg9[%c0_17, %c0_18] : memref<8x256xf32, #tpu.memory_space<vmem>>, vector<8x256xf32>
    tpu.vector_store %arg9[%c0_17, %c0_18], %24 {strides = array<i32>} : memref<8x256xf32, #tpu.memory_space<vmem>>, vector<8x256xf32>,
    return
  }
  func.func @transform_0(%arg0: i32, %arg1: i32, %arg2: memref<1xi32, #tpu.memory_space<smem>>) -> (i32, i32) {
    %c1_i32 = arith.constant 1 : i32
    %0 = arith.subi %arg0, %c1_i32 : i32
    %c0_i32 = arith.constant 0 : i32
    %1 = arith.maxsi %0, %c0_i32 : i32
    %c0_i32_0 = arith.constant 0 : i32
    return %arg1, %1 : i32, i32
  }
  func.func @transform_1(%arg0: i32, %arg1: i32, %arg2: memref<1xi32, #tpu.memory_space<smem>>) -> (i32, i32) {
    %c0_i32 = arith.constant 0 : i32
    return %arg1, %arg0 : i32, i32
  }
  func.func @transform_2(%arg0: i32, %arg1: i32, %arg2: memref<1xi32, #tpu.memory_space<smem>>) -> (i32, i32) {
    %c1_i32 = arith.constant 1 : i32
    %0 = arith.addi %arg0, %c1_i32 : i32
    %c0_i32 = arith.constant 0 : i32
    %1 = arith.minsi %0, %c0_i32 : i32
    %c0_i32_0 = arith.constant 0 : i32
    return %arg1, %1 : i32, i32
  }
  func.func @transform_3(%arg0: i32, %arg1: i32, %arg2: memref<1xi32, #tpu.memory_space<smem>>) -> (i32, i32, i32) {
    %0 = arith.index_cast %arg0 : i32 to index
    %1 = memref.load %arg2[%0] : memref<1xi32, #tpu.memory_space<smem>>
    %c0_i32 = arith.constant 0 : i32
    %c0_i32_0 = arith.constant 0 : i32
    %c0_i32_1 = arith.constant 0 : i32
    return %1, %c0_i32, %c0_i32_0 : i32, i32, i32
  }
  func.func @transform_4(%arg0: i32, %arg1: i32, %arg2: memref<1xi32, #tpu.memory_space<smem>>) -> (i32, i32, i32) {
    %0 = arith.index_cast %arg0 : i32 to index
    %1 = memref.load %arg2[%0] : memref<1xi32, #tpu.memory_space<smem>>
    %c0_i32 = arith.constant 0 : i32
    %c0_i32_0 = arith.constant 0 : i32
    %c0_i32_1 = arith.constant 0 : i32
    return %1, %c0_i32, %c0_i32_0 : i32, i32, i32
  }
  func.func @transform_5(%arg0: i32, %arg1: i32, %arg2: memref<1xi32, #tpu.memory_space<smem>>) -> (i32, i32) {
    %c0_i32 = arith.constant 0 : i32
    %c0_i32_0 = arith.constant 0 : i32
    return %arg1, %c0_i32 : i32, i32
  }
  func.func @transform_6(%arg0: i32, %arg1: i32, %arg2: memref<1xi32, #tpu.memory_space<smem>>) -> (i32, i32) {
    %c0_i32 = arith.constant 0 : i32
    return %arg1, %arg0 : i32, i32
  }
}

</mosaic_0001>

<llo_original>
// kernel: tpu_custom_call.1
$region0: #{tpu_custom_call.1}
  #allocation0 [shape = 'u32[]', space=smem, size = 0x4, offset = 0x4, fixed_abs, tag = 'smem constant byte address 0x4 - core index']
  #allocation1 [shape = 'u32[72,128]{1,0:T(1,128)}', space=vmem, size = 0x9000, scoped, tag = 'internal scratch']
  #allocation2 [shape = 's32[1]{0}', space=sflag, size = 0x4, scoped, tag = 'scoped memory for tpu_custom_call.1']
  #allocation3 [shape = 's32[1]{0:T(128)S(6)}', space=smem, size = 0x200, scoped, tag = 'prefetched SMEM operand 0']
  %s0 = inlined_call_operand.<no memory space> [shape: s32[1], index: 0, kind: input, shape index: {}]
  %s1 = inlined_call_operand.hbm [shape: f32[8,256], index: 1, kind: input, shape index: {}]
  %s2 = inlined_call_operand.hbm [shape: f32[8,256], index: 2, kind: input, shape index: {}]
  %s3 = inlined_call_operand.hbm [shape: f32[8,256], index: 3, kind: input, shape index: {}]
  %s4 = inlined_call_operand.hbm [shape: f32[1,768,640], index: 4, kind: input, shape index: {}]
  %s5 = inlined_call_operand.hbm [shape: f32[1,640,256], index: 5, kind: input, shape index: {}]
  %s6 = inlined_call_operand.vmem [shape: f32[8,2], index: 6, kind: input, shape index: {}]
  %s7 = inlined_call_operand.hbm [shape: f32[8,256], index: 7, kind: output, shape index: {}]
  %s8 = sld [smem:[#allocation0]]
  $region54: #{tpu_custom_call.1} parent=0
    _
  %s10 = ssub.s32 1, %s8
  %s11 = scalar_select 0, %s10, %s8
  %12 = sst [smem:[#allocation3]] %s0
  $region1: #{tpu_custom_call.1} parent=0
    #allocation4 [shape = 'u8[8192]{0}', space=vmem, size = 0x2000, scoped, tag = 'input window, operand 1, single buffered']
    #allocation5 [shape = 's32[1]{0}', space=sflag, size = 0x4, scoped, tag = 'scoped memory for tpu_custom_call.1']
    #allocation6 [shape = 's32[1]{0}', space=sflag, size = 0x4, scoped, tag = 'scoped memory for tpu_custom_call.1']
    #allocation7 [shape = 'u8[8192]{0}', space=vmem, size = 0x2000, scoped, tag = 'input window, operand 2, single buffered']
    #allocation8 [shape = 's32[1]{0}', space=sflag, size = 0x4, scoped, tag = 'scoped memory for tpu_custom_call.1']
    #allocation9 [shape = 'u8[8192]{0}', space=vmem, size = 0x2000, scoped, tag = 'input window, operand 3, single buffered']
    #allocation10 [shape = 'u8[1966080]{0}', space=vmem, size = 0x1e0000, scoped, tag = 'input window, operand 4, single buffered']
    #allocation11 [shape = 's32[1]{0}', space=sflag, size = 0x4, scoped, tag = 'scoped memory for tpu_custom_call.1']
    #allocation12 [shape = 'u8[655360]{0}', space=vmem, size = 0xa0000, scoped, tag = 'input window, operand 5, single buffered']
    #allocation13 [shape = 'u8[8192]{0}', space=vmem, size = 0x2000, scoped, tag = 'output window, operand 0, single buffered']
    %13 = vsyncpa [#allocation5], 0
    %14 = vsyncpa [#allocation8], 0
    %15 = vsyncpa [#allocation11], 0
    %16 = vsyncpa [#allocation6], 0
    // Predicated region
    $region2: #{tpu_custom_call.1} parent=1 // pred_check
      _
    $region3: #{tpu_custom_call.1} parent=1 // pred_check_branch
      %18 = sbr.rel (0) target = $region5
    $region4: #{tpu_custom_call.1} parent=1 // pred_region
      %s19 = ssub.s32 0, 1
      %p20 = scmp.gt.s32.totalorder %s19, 0
      %s21 = scalar_select %p20, %s19, 0
      %s22 = smul.u32 2, %s21
      %24 = vsyncadd [#allocation5], 0
      %s25 = smul.addr %s22, 8
      %s26 = scalar_lea.hbm %s1, %s25
      %s28 = sshll.u32 %s26, 4
      %s29 = int_to_ptr.hbm [resolvable:$true] %s28
      %s30 = sshll.u32 [#allocation4], 4
      %s31 = int_to_ptr.vmem [resolvable:$true] %s30
      %33 = dma.hbm_to_vmem [thread:$0]  %s29, 256, %s31, [#allocation5]
    $region5: #{tpu_custom_call.1} parent=1 // pred_fallthru
      _
    // Predicated region
    $region6: #{tpu_custom_call.1} parent=1 // pred_check
      _
    $region7: #{tpu_custom_call.1} parent=1 // pred_check_branch
      %35 = sbr.rel (0) target = $region9
    $region8: #{tpu_custom_call.1} parent=1 // pred_region
      %37 = vsyncadd [#allocation8], 0
      %s39 = sshll.u32 %s2, 4
      %s40 = int_to_ptr.hbm [resolvable:$true] %s39
      %s41 = sshll.u32 [#allocation7], 4
      %s42 = int_to_ptr.vmem [resolvable:$true] %s41
      %44 = dma.hbm_to_vmem [thread:$0]  %s40, 256, %s42, [#allocation8]
    $region9: #{tpu_custom_call.1} parent=1 // pred_fallthru
      _
    // Predicated region
    $region10: #{tpu_custom_call.1} parent=1 // pred_check
      _
    $region11: #{tpu_custom_call.1} parent=1 // pred_check_branch
      %46 = sbr.rel (0) target = $region13
    $region12: #{tpu_custom_call.1} parent=1 // pred_region
      %s47 = sadd.s32 0, 1
      %p48 = scmp.lt.s32.totalorder %s47, 0
      %s49 = scalar_select %p48, %s47, 0
      %s50 = smul.u32 2, %s49
      %52 = vsyncadd [#allocation8], 0
      %s53 = smul.addr %s50, 8
      %s54 = scalar_lea.hbm %s3, %s53
      %s56 = sshll.u32 %s54, 4
      %s57 = int_to_ptr.hbm [resolvable:$true] %s56
      %s58 = sshll.u32 [#allocation9], 4
      %s59 = int_to_ptr.vmem [resolvable:$true] %s58
      %61 = dma.hbm_to_vmem [thread:$0]  %s57, 256, %s59, [#allocation8]
    $region13: #{tpu_custom_call.1} parent=1 // pred_fallthru
      _
    // Predicated region
    $region14: #{tpu_custom_call.1} parent=1 // pred_check
      _
    $region15: #{tpu_custom_call.1} parent=1 // pred_check_branch
      %63 = sbr.rel (0) target = $region17
    $region16: #{tpu_custom_call.1} parent=1 // pred_region
      %s64 = sld [smem:[#allocation3]]
      %66 = vsyncadd [#allocation11], 0
      %s67 = smul.addr %s64, 480
      %s68 = smul.addr %s67, 8
      %s69 = scalar_lea.hbm %s4, %s68
      %s70 = sshll.u32 %s69, 4
      %s71 = int_to_ptr.hbm [resolvable:$true] %s70
      %s72 = sshll.u32 [#allocation10], 4
      %s73 = int_to_ptr.vmem [resolvable:$true] %s72
      %78 = dma.hbm_to_vmem [thread:$0]  %s71, 61440, %s73, [#allocation11], 640, 640, 40
    $region17: #{tpu_custom_call.1} parent=1 // pred_fallthru
      _
    // Predicated region
    $region18: #{tpu_custom_call.1} parent=1 // pred_check
      _
    $region19: #{tpu_custom_call.1} parent=1 // pred_check_branch
      %80 = sbr.rel (0) target = $region21
    $region20: #{tpu_custom_call.1} parent=1 // pred_region
      %s81 = sld [smem:[#allocation3]]
      %83 = vsyncadd [#allocation11], 0
      %s84 = smul.addr %s81, 160
      %s85 = smul.addr %s84, 8
      %s86 = scalar_lea.hbm %s5, %s85
      %s87 = sshll.u32 %s86, 4
      %s88 = int_to_ptr.hbm [resolvable:$true] %s87
      %s89 = sshll.u32 [#allocation12], 4
      %s90 = int_to_ptr.vmem [resolvable:$true] %s89
      %95 = dma.hbm_to_vmem [thread:$0]  %s88, 20480, %s90, [#allocation11], 256, 256, 16
    $region21: #{tpu_custom_call.1} parent=1 // pred_fallthru
      _
    // Predicated region
    $region22: #{tpu_custom_call.1} parent=1 // pred_check
      _
    $region23: #{tpu_custom_call.1} parent=1 // pred_check_branch
      %97 = sbr.rel (0) target = $region25
    $region24: #{tpu_custom_call.1} parent=1 // pred_region
      _
    $region25: #{tpu_custom_call.1} parent=1 // pred_fallthru
      _
    // Predicated region
    $region26: #{tpu_custom_call.1} parent=1 // pred_check
      _
    $region27: #{tpu_custom_call.1} parent=1 // pred_check_branch
      %99 = sbr.rel (0) target = $region29
    $region28: #{tpu_custom_call.1} parent=1 // pred_region
      %101 = dma.done [#allocation5], 256
    $region29: #{tpu_custom_call.1} parent=1 // pred_fallthru
      _
    // Predicated region
    $region30: #{tpu_custom_call.1} parent=1 // pred_check
      _
    $region31: #{tpu_custom_call.1} parent=1 // pred_check_branch
      %103 = sbr.rel (0) target = $region33
    $region32: #{tpu_custom_call.1} parent=1 // pred_region
      %105 = dma.done [#allocation8], 256
    $region33: #{tpu_custom_call.1} parent=1 // pred_fallthru
      _
    // Predicated region
    $region34: #{tpu_custom_call.1} parent=1 // pred_check
      _
    $region35: #{tpu_custom_call.1} parent=1 // pred_check_branch
      %107 = sbr.rel (0) target = $region37
    $region36: #{tpu_custom_call.1} parent=1 // pred_region
      %109 = dma.done [#allocation8], 256
    $region37: #{tpu_custom_call.1} parent=1 // pred_fallthru
      _
    // Predicated region
    $region38: #{tpu_custom_call.1} parent=1 // pred_check
      _
    $region39: #{tpu_custom_call.1} parent=1 // pred_check_branch
      %111 = sbr.rel (0) target = $region41
    $region40: #{tpu_custom_call.1} parent=1 // pred_region
      %113 = dma.done [#allocation11], 61440
    $region41: #{tpu_custom_call.1} parent=1 // pred_fallthru
      _
    // Predicated region
    $region42: #{tpu_custom_call.1} parent=1 // pred_check
      _
    $region43: #{tpu_custom_call.1} parent=1 // pred_check_branch
      %115 = sbr.rel (0) target = $region45
    $region44: #{tpu_custom_call.1} parent=1 // pred_region
      %117 = dma.done [#allocation11], 20480
    $region45: #{tpu_custom_call.1} parent=1 // pred_fallthru
      _
    %s118 = ssub.s32 0, 1
    %p119 = scmp.gt.s32.totalorder %s118, 0
    %s120 = scalar_select %p119, %s118, 0
    %s121 = smul.u32 2, %s120
    %s122 = sadd.s32 0, 1
    %p123 = scmp.lt.s32.totalorder %s122, 0
    %s124 = scalar_select %p123, %s122, 0
    %s125 = smul.u32 2, %s124
    %s126 = sld [smem:[#allocation3]]
    %s127 = sld [smem:[#allocation3]]
    %v128 = vld [vmem:[#allocation10] sm:$0xff]
    %v129 = vld [vmem:[#allocation10 + $0x8] sm:$0xff]
    %v130 = vld [vmem:[#allocation10 + $0x10] sm:$0xff]
    %v131 = vld [vmem:[#allocation10 + $0x18] sm:$0xff]
    %v132 = vld [vmem:[#allocation10 + $0x20] sm:$0xff]
    %v133 = vld [vmem:[#allocation10 + $0x28] sm:$0xff]
    %v134 = vld [vmem:[#allocation10 + $0x30] sm:$0xff]
    %v135 = vld [vmem:[#allocation10 + $0x38] sm:$0xff]
    %v136 = vld [vmem:[#allocation10 + $0x40] sm:$0xff]
    %v137 = vld [vmem:[#allocation10 + $0x48] sm:$0xff]
    %v138 = vld [vmem:[#allocation10 + $0x50] sm:$0xff]
    %v139 = vld [vmem:[#allocation10 + $0x58] sm:$0xff]
    %v140 = vld [vmem:[#allocation10 + $0x60] sm:$0xff]
    %v141 = vld [vmem:[#allocation10 + $0x68] sm:$0xff]
    %v142 = vld [vmem:[#allocation10 + $0x70] sm:$0xff]
    %v143 = vld [vmem:[#allocation10 + $0x78] sm:$0xff]
    %v144 = vld [vmem:[#allocation10 + $0x80] sm:$0xff]
    %v145 = vld [vmem:[#allocation10 + $0x88] sm:$0xff]
    %v146 = vld [vmem:[#allocation10 + $0x90] sm:$0xff]
    %v147 = vld [vmem:[#allocation10 + $0x98] sm:$0xff]
    %v148 = vld [vmem:[#allocation10 + $0xa0] sm:$0xff]
    %v149 = vld [vmem:[#allocation10 + $0xa8] sm:$0xff]
    %v150 = vld [vmem:[#allocation10 + $0xb0] sm:$0xff]
    %v151 = vld [vmem:[#allocation10 + $0xb8] sm:$0xff]
    %v152 = vld [vmem:[#allocation10 + $0xc0] sm:$0xff]
    %v153 = vld [vmem:[#allocation10 + $0xc8] sm:$0xff]
    %v154 = vld [vmem:[#allocation10 + $0xd0] sm:$0xff]
    %v155 = vld [vmem:[#allocation10 + $0xd8] sm:$0xff]
    %v156 = vld [vmem:[#allocation10 + $0xe0] sm:$0xff]
    %v157 = vld [vmem:[#allocation10 + $0xe8] sm:$0xff]
    %v158 = vld [vmem:[#allocation10 + $0xf0] sm:$0xff]
    %v159 = vld [vmem:[#allocation10 + $0xf8] sm:$0xff]
    %v160 = vld [vmem:[#allocation10 + $0x100] sm:$0xff]
    %v161 = vld [vmem:[#allocation10 + $0x108] sm:$0xff]
    %v162 = vld [vmem:[#allocation10 + $0x110] sm:$0xff]
    %v163 = vld [vmem:[#allocation10 + $0x118] sm:$0xff]
    %v164 = vld [vmem:[#allocation10 + $0x120] sm:$0xff]
    %v165 = vld [vmem:[#allocation10 + $0x128] sm:$0xff]
    %v166 = vld [vmem:[#allocation10 + $0x130] sm:$0xff]
    %v167 = vld [vmem:[#allocation10 + $0x138] sm:$0xff]
    %v168 = vld [vmem:[#allocation10 + $0x140] sm:$0xff]
    %v169 = vld [vmem:[#allocation10 + $0x148] sm:$0xff]
    %v170 = vld [vmem:[#allocation10 + $0x150] sm:$0xff]
    %v171 = vld [vmem:[#allocation10 + $0x158] sm:$0xff]
    %v172 = vld [vmem:[#allocation10 + $0x160] sm:$0xff]
    %v173 = vld [vmem:[#allocation10 + $0x168] sm:$0xff]
    %v174 = vld [vmem:[#allocation10 + $0x170] sm:$0xff]
    %v175 = vld [vmem:[#allocation10 + $0x178] sm:$0xff]
    %v176 = vld [vmem:[#allocation10 + $0x180] sm:$0xff]
    %v177 = vld [vmem:[#allocation10 + $0x188] sm:$0xff]
    %v178 = vld [vmem:[#allocation10 + $0x190] sm:$0xff]
    %v179 = vld [vmem:[#allocation10 + $0x198] sm:$0xff]
    %v180 = vld [vmem:[#allocation10 + $0x1a0] sm:$0xff]
    %v181 = vld [vmem:[#allocation10 + $0x1a8] sm:$0xff]
    %v182 = vld [vmem:[#allocation10 + $0x1b0] sm:$0xff]
    %v183 = vld [vmem:[#allocation10 + $0x1b8] sm:$0xff]
    %v184 = vld [vmem:[#allocation10 + $0x1c0] sm:$0xff]
    %v185 = vld [vmem:[#allocation10 + $0x1c8] sm:$0xff]
    %v186 = vld [vmem:[#allocation10 + $0x1d0] sm:$0xff]
    %v187 = vld [vmem:[#allocation10 + $0x1d8] sm:$0xff]
    %v188 = vld [vmem:[#allocation10 + $0x1e0] sm:$0xff]
    %v189 = vld [vmem:[#allocation10 + $0x1e8] sm:$0xff]
    %v190 = vld [vmem:[#allocation10 + $0x1f0] sm:$0xff]
    %v191 = vld [vmem:[#allocation10 + $0x1f8] sm:$0xff]
    %v192 = vld [vmem:[#allocation10 + $0x200] sm:$0xff]
    %v193 = vld [vmem:[#allocation10 + $0x208] sm:$0xff]
    %v194 = vld [vmem:[#allocation10 + $0x210] sm:$0xff]
    %v195 = vld [vmem:[#allocation10 + $0x218] sm:$0xff]
    %v196 = vld [vmem:[#allocation10 + $0x220] sm:$0xff]
    %v197 = vld [vmem:[#allocation10 + $0x228] sm:$0xff]
    %v198 = vld [vmem:[#allocation10 + $0x230] sm:$0xff]
    %v199 = vld [vmem:[#allocation10 + $0x238] sm:$0xff]
    %v200 = vld [vmem:[#allocation10 + $0x240] sm:$0xff]
    %v201 = vld [vmem:[#allocation10 + $0x248] sm:$0xff]
    %v202 = vld [vmem:[#allocation10 + $0x250] sm:$0xff]
    %v203 = vld [vmem:[#allocation10 + $0x258] sm:$0xff]
    %v204 = vld [vmem:[#allocation10 + $0x260] sm:$0xff]
    %v205 = vld [vmem:[#allocation10 + $0x268] sm:$0xff]
    %v206 = vld [vmem:[#allocation10 + $0x270] sm:$0xff]
    %v207 = vld [vmem:[#allocation10 + $0x278] sm:$0xff]
    %v208 = vld [vmem:[#allocation10 + $0x280] sm:$0xff]
    %v209 = vld [vmem:[#allocation10 + $0x288] sm:$0xff]
    %v210 = vld [vmem:[#allocation10 + $0x290] sm:$0xff]
    %v211 = vld [vmem:[#allocation10 + $0x298] sm:$0xff]
    %v212 = vld [vmem:[#allocation10 + $0x2a0] sm:$0xff]
    %v213 = vld [vmem:[#allocation10 + $0x2a8] sm:$0xff]
    %v214 = vld [vmem:[#allocation10 + $0x2b0] sm:$0xff]
    %v215 = vld [vmem:[#allocation10 + $0x2b8] sm:$0xff]
    %v216 = vld [vmem:[#allocation10 + $0x2c0] sm:$0xff]
    %v217 = vld [vmem:[#allocation10 + $0x2c8] sm:$0xff]
    %v218 = vld [vmem:[#allocation10 + $0x2d0] sm:$0xff]
    %v219 = vld [vmem:[#allocation10 + $0x2d8] sm:$0xff]
    %v220 = vld [vmem:[#allocation10 + $0x2e0] sm:$0xff]
    %v221 = vld [vmem:[#allocation10 + $0x2e8] sm:$0xff]
    %v222 = vld [vmem:[#allocation10 + $0x2f0] sm:$0xff]
    %v223 = vld [vmem:[#allocation10 + $0x2f8] sm:$0xff]
    %v224 = vld [vmem:[#allocation10 + $0x300] sm:$0xff]
    %v225 = vld [vmem:[#allocation10 + $0x308] sm:$0xff]
    %v226 = vld [vmem:[#allocation10 + $0x310] sm:$0xff]
    %v227 = vld [vmem:[#allocation10 + $0x318] sm:$0xff]
    %v228 = vld [vmem:[#allocation10 + $0x320] sm:$0xff]
    %v229 = vld [vmem:[#allocation10 + $0x328] sm:$0xff]
    %v230 = vld [vmem:[#allocation10 + $0x330] sm:$0xff]
    %v231 = vld [vmem:[#allocation10 + $0x338] sm:$0xff]
    %v232 = vld [vmem:[#allocation10 + $0x340] sm:$0xff]
    %v233 = vld [vmem:[#allocation10 + $0x348] sm:$0xff]
    %v234 = vld [vmem:[#allocation10 + $0x350] sm:$0xff]
    %v235 = vld [vmem:[#allocation10 + $0x358] sm:$0xff]
    %v236 = vld [vmem:[#allocation10 + $0x360] sm:$0xff]
    %v237 = vld [vmem:[#allocation10 + $0x368] sm:$0xff]
    %v238 = vld [vmem:[#allocation10 + $0x370] sm:$0xff]
    %v239 = vld [vmem:[#allocation10 + $0x378] sm:$0xff]
    %v240 = vld [vmem:[#allocation10 + $0x380] sm:$0xff]
    %v241 = vld [vmem:[#allocation10 + $0x388] sm:$0xff]
    %v242 = vld [vmem:[#allocation10 + $0x390] sm:$0xff]
    %v243 = vld [vmem:[#allocation10 + $0x398] sm:$0xff]
    %v244 = vld [vmem:[#allocation10 + $0x3a0] sm:$0xff]
    %v245 = vld [vmem:[#allocation10 + $0x3a8] sm:$0xff]
    %v246 = vld [vmem:[#allocation10 + $0x3b0] sm:$0xff]
    %v247 = vld [vmem:[#allocation10 + $0x3b8] sm:$0xff]
    %v248 = vld [vmem:[#allocation10 + $0x3c0] sm:$0xff]
    %v249 = vld [vmem:[#allocation10 + $0x3c8] sm:$0xff]
    %v250 = vld [vmem:[#allocation10 + $0x3d0] sm:$0xff]
    %v251 = vld [vmem:[#allocation10 + $0x3d8] sm:$0xff]
    %v252 = vld [vmem:[#allocation10 + $0x3e0] sm:$0xff]
    %v253 = vld [vmem:[#allocation10 + $0x3e8] sm:$0xff]
    %v254 = vld [vmem:[#allocation10 + $0x3f0] sm:$0xff]
    %v255 = vld [vmem:[#allocation10 + $0x3f8] sm:$0xff]
    %v256 = vld [vmem:[#allocation10 + $0x400] sm:$0xff]
    %v257 = vld [vmem:[#allocation10 + $0x408] sm:$0xff]
    %v258 = vld [vmem:[#allocation10 + $0x410] sm:$0xff]
    %v259 = vld [vmem:[#allocation10 + $0x418] sm:$0xff]
    %v260 = vld [vmem:[#allocation10 + $0x420] sm:$0xff]
    %v261 = vld [vmem:[#allocation10 + $0x428] sm:$0xff]
    %v262 = vld [vmem:[#allocation10 + $0x430] sm:$0xff]
    %v263 = vld [vmem:[#allocation10 + $0x438] sm:$0xff]
    %v264 = vld [vmem:[#allocation10 + $0x440] sm:$0xff]
    %v265 = vld [vmem:[#allocation10 + $0x448] sm:$0xff]
    %v266 = vld [vmem:[#allocation10 + $0x450] sm:$0xff]
    %v267 = vld [vmem:[#allocation10 + $0x458] sm:$0xff]
    %v268 = vld [vmem:[#allocation10 + $0x460] sm:$0xff]
    %v269 = vld [vmem:[#allocation10 + $0x468] sm:$0xff]
    %v270 = vld [vmem:[#allocation10 + $0x470] sm:$0xff]
    %v271 = vld [vmem:[#allocation10 + $0x478] sm:$0xff]
    %v272 = vld [vmem:[#allocation10 + $0x480] sm:$0xff]
    %v273 = vld [vmem:[#allocation10 + $0x488] sm:$0xff]
    %v274 = vld [vmem:[#allocation10 + $0x490] sm:$0xff]
    %v275 = vld [vmem:[#allocation10 + $0x498] sm:$0xff]
    %v276 = vld [vmem:[#allocation10 + $0x4a0] sm:$0xff]
    %v277 = vld [vmem:[#allocation10 + $0x4a8] sm:$0xff]
    %v278 = vld [vmem:[#allocation10 + $0x4b0] sm:$0xff]
    %v279 = vld [vmem:[#allocation10 + $0x4b8] sm:$0xff]
    %v280 = vld [vmem:[#allocation10 + $0x4c0] sm:$0xff]
    %v281 = vld [vmem:[#allocation10 + $0x4c8] sm:$0xff]
    %v282 = vld [vmem:[#allocation10 + $0x4d0] sm:$0xff]
    %v283 = vld [vmem:[#allocation10 + $0x4d8] sm:$0xff]
    %v284 = vld [vmem:[#allocation10 + $0x4e0] sm:$0xff]
    %v285 = vld [vmem:[#allocation10 + $0x4e8] sm:$0xff]
    %v286 = vld [vmem:[#allocation10 + $0x4f0] sm:$0xff]
    %v287 = vld [vmem:[#allocation10 + $0x4f8] sm:$0xff]
    %v288 = vld [vmem:[#allocation10 + $0x500] sm:$0xff]
    %v289 = vld [vmem:[#allocation10 + $0x508] sm:$0xff]
    %v290 = vld [vmem:[#allocation10 + $0x510] sm:$0xff]
    %v291 = vld [vmem:[#allocation10 + $0x518] sm:$0xff]
    %v292 = vld [vmem:[#allocation10 + $0x520] sm:$0xff]
    %v293 = vld [vmem:[#allocation10 + $0x528] sm:$0xff]
    %v294 = vld [vmem:[#allocation10 + $0x530] sm:$0xff]
    %v295 = vld [vmem:[#allocation10 + $0x538] sm:$0xff]
    %v296 = vld [vmem:[#allocation10 + $0x540] sm:$0xff]
    %v297 = vld [vmem:[#allocation10 + $0x548] sm:$0xff]
    %v298 = vld [vmem:[#allocation10 + $0x550] sm:$0xff]
    %v299 = vld [vmem:[#allocation10 + $0x558] sm:$0xff]
    %v300 = vld [vmem:[#allocation10 + $0x560] sm:$0xff]
    %v301 = vld [vmem:[#allocation10 + $0x568] sm:$0xff]
    %v302 = vld [vmem:[#allocation10 + $0x570] sm:$0xff]
    %v303 = vld [vmem:[#allocation10 + $0x578] sm:$0xff]
    %v304 = vld [vmem:[#allocation10 + $0x580] sm:$0xff]
    %v305 = vld [vmem:[#allocation10 + $0x588] sm:$0xff]
    %v306 = vld [vmem:[#allocation10 + $0x590] sm:$0xff]
    %v307 = vld [vmem:[#allocation10 + $0x598] sm:$0xff]
    %v308 = vld [vmem:[#allocation10 + $0x5a0] sm:$0xff]
    %v309 = vld [vmem:[#allocation10 + $0x5a8] sm:$0xff]
    %v310 = vld [vmem:[#allocation10 + $0x5b0] sm:$0xff]
    %v311 = vld [vmem:[#allocation10 + $0x5b8] sm:$0xff]
    %v312 = vld [vmem:[#allocation10 + $0x5c0] sm:$0xff]
    %v313 = vld [vmem:[#allocation10 + $0x5c8] sm:$0xff]
    %v314 = vld [vmem:[#allocation10 + $0x5d0] sm:$0xff]
    %v315 = vld [vmem:[#allocation10 + $0x5d8] sm:$0xff]
    %v316 = vld [vmem:[#allocation10 + $0x5e0] sm:$0xff]
    %v317 = vld [vmem:[#allocation10 + $0x5e8] sm:$0xff]
    %v318 = vld [vmem:[#allocation10 + $0x5f0] sm:$0xff]
    %v319 = vld [vmem:[#allocation10 + $0x5f8] sm:$0xff]
    %v320 = vld [vmem:[#allocation10 + $0x600] sm:$0xff]
    %v321 = vld [vmem:[#allocation10 + $0x608] sm:$0xff]
    %v322 = vld [vmem:[#allocation10 + $0x610] sm:$0xff]
    %v323 = vld [vmem:[#allocation10 + $0x618] sm:$0xff]
    %v324 = vld [vmem:[#allocation10 + $0x620] sm:$0xff]
    %v325 = vld [vmem:[#allocation10 + $0x628] sm:$0xff]
    %v326 = vld [vmem:[#allocation10 + $0x630] sm:$0xff]
    %v327 = vld [vmem:[#allocation10 + $0x638] sm:$0xff]
    %v328 = vld [vmem:[#allocation10 + $0x640] sm:$0xff]
    %v329 = vld [vmem:[#allocation10 + $0x648] sm:$0xff]
    %v330 = vld [vmem:[#allocation10 + $0x650] sm:$0xff]
    %v331 = vld [vmem:[#allocation10 + $0x658] sm:$0xff]
    %v332 = vld [vmem:[#allocation10 + $0x660] sm:$0xff]
    %v333 = vld [vmem:[#allocation10 + $0x668] sm:$0xff]
    %v334 = vld [vmem:[#allocation10 + $0x670] sm:$0xff]
    %v335 = vld [vmem:[#allocation10 + $0x678] sm:$0xff]
    %v336 = vld [vmem:[#allocation10 + $0x680] sm:$0xff]
    %v337 = vld [vmem:[#allocation10 + $0x688] sm:$0xff]
    %v338 = vld [vmem:[#allocation10 + $0x690] sm:$0xff]
    %v339 = vld [vmem:[#allocation10 + $0x698] sm:$0xff]
    %v340 = vld [vmem:[#allocation10 + $0x6a0] sm:$0xff]
    %v341 = vld [vmem:[#allocation10 + $0x6a8] sm:$0xff]
    %v342 = vld [vmem:[#allocation10 + $0x6b0] sm:$0xff]
    %v343 = vld [vmem:[#allocation10 + $0x6b8] sm:$0xff]
    %v344 = vld [vmem:[#allocation10 + $0x6c0] sm:$0xff]
    %v345 = vld [vmem:[#allocation10 + $0x6c8] sm:$0xff]
    %v346 = vld [vmem:[#allocation10 + $0x6d0] sm:$0xff]
    %v347 = vld [vmem:[#allocation10 + $0x6d8] sm:$0xff]
    %v348 = vld [vmem:[#allocation10 + $0x6e0] sm:$0xff]
    %v349 = vld [vmem:[#allocation10 + $0x6e8] sm:$0xff]
    %v350 = vld [vmem:[#allocation10 + $0x6f0] sm:$0xff]
    %v351 = vld [vmem:[#allocation10 + $0x6f8] sm:$0xff]
    %v352 = vld [vmem:[#allocation10 + $0x700] sm:$0xff]
    %v353 = vld [vmem:[#allocation10 + $0x708] sm:$0xff]
    %v354 = vld [vmem:[#allocation10 + $0x710] sm:$0xff]
    %v355 = vld [vmem:[#allocation10 + $0x718] sm:$0xff]
    %v356 = vld [vmem:[#allocation10 + $0x720] sm:$0xff]
    %v357 = vld [vmem:[#allocation10 + $0x728] sm:$0xff]
    %v358 = vld [vmem:[#allocation10 + $0x730] sm:$0xff]
    %v359 = vld [vmem:[#allocation10 + $0x738] sm:$0xff]
    %v360 = vld [vmem:[#allocation10 + $0x740] sm:$0xff]
    %v361 = vld [vmem:[#allocation10 + $0x748] sm:$0xff]
    %v362 = vld [vmem:[#allocation10 + $0x750] sm:$0xff]
    %v363 = vld [vmem:[#allocation10 + $0x758] sm:$0xff]
    %v364 = vld [vmem:[#allocation10 + $0x760] sm:$0xff]
    %v365 = vld [vmem:[#allocation10 + $0x768] sm:$0xff]
    %v366 = vld [vmem:[#allocation10 + $0x770] sm:$0xff]
    %v367 = vld [vmem:[#allocation10 + $0x778] sm:$0xff]
    %v368 = vld [vmem:[#allocation10 + $0x780] sm:$0xff]
    %v369 = vld [vmem:[#allocation10 + $0x788] sm:$0xff]
    %v370 = vld [vmem:[#allocation10 + $0x790] sm:$0xff]
    %v371 = vld [vmem:[#allocation10 + $0x798] sm:$0xff]
    %v372 = vld [vmem:[#allocation10 + $0x7a0] sm:$0xff]
    %v373 = vld [vmem:[#allocation10 + $0x7a8] sm:$0xff]
    %v374 = vld [vmem:[#allocation10 + $0x7b0] sm:$0xff]
    %v375 = vld [vmem:[#allocation10 + $0x7b8] sm:$0xff]
    %v376 = vld [vmem:[#allocation10 + $0x7c0] sm:$0xff]
    %v377 = vld [vmem:[#allocation10 + $0x7c8] sm:$0xff]
    %v378 = vld [vmem:[#allocation10 + $0x7d0] sm:$0xff]
    %v379 = vld [vmem:[#allocation10 + $0x7d8] sm:$0xff]
    %v380 = vld [vmem:[#allocation10 + $0x7e0] sm:$0xff]
    %v381 = vld [vmem:[#allocation10 + $0x7e8] sm:$0xff]
    %v382 = vld [vmem:[#allocation10 + $0x7f0] sm:$0xff]
    %v383 = vld [vmem:[#allocation10 + $0x7f8] sm:$0xff]
    %v384 = vld [vmem:[#allocation10 + $0x800] sm:$0xff]
    %v385 = vld [vmem:[#allocation10 + $0x808] sm:$0xff]
    %v386 = vld [vmem:[#allocation10 + $0x810] sm:$0xff]
    %v387 = vld [vmem:[#allocation10 + $0x818] sm:$0xff]
    %v388 = vld [vmem:[#allocation10 + $0x820] sm:$0xff]
    %v389 = vld [vmem:[#allocation10 + $0x828] sm:$0xff]
    %v390 = vld [vmem:[#allocation10 + $0x830] sm:$0xff]
    %v391 = vld [vmem:[#allocation10 + $0x838] sm:$0xff]
    %v392 = vld [vmem:[#allocation10 + $0x840] sm:$0xff]
    %v393 = vld [vmem:[#allocation10 + $0x848] sm:$0xff]
    %v394 = vld [vmem:[#allocation10 + $0x850] sm:$0xff]
    %v395 = vld [vmem:[#allocation10 + $0x858] sm:$0xff]
    %v396 = vld [vmem:[#allocation10 + $0x860] sm:$0xff]
    %v397 = vld [vmem:[#allocation10 + $0x868] sm:$0xff]
    %v398 = vld [vmem:[#allocation10 + $0x870] sm:$0xff]
    %v399 = vld [vmem:[#allocation10 + $0x878] sm:$0xff]
    %v400 = vld [vmem:[#allocation10 + $0x880] sm:$0xff]
    %v401 = vld [vmem:[#allocation10 + $0x888] sm:$0xff]
    %v402 = vld [vmem:[#allocation10 + $0x890] sm:$0xff]
    %v403 = vld [vmem:[#allocation10 + $0x898] sm:$0xff]
    %v404 = vld [vmem:[#allocation10 + $0x8a0] sm:$0xff]
    %v405 = vld [vmem:[#allocation10 + $0x8a8] sm:$0xff]
    %v406 = vld [vmem:[#allocation10 + $0x8b0] sm:$0xff]
    %v407 = vld [vmem:[#allocation10 + $0x8b8] sm:$0xff]
    %v408 = vld [vmem:[#allocation10 + $0x8c0] sm:$0xff]
    %v409 = vld [vmem:[#allocation10 + $0x8c8] sm:$0xff]
    %v410 = vld [vmem:[#allocation10 + $0x8d0] sm:$0xff]
    %v411 = vld [vmem:[#allocation10 + $0x8d8] sm:$0xff]
    %v412 = vld [vmem:[#allocation10 + $0x8e0] sm:$0xff]
    %v413 = vld [vmem:[#allocation10 + $0x8e8] sm:$0xff]
    %v414 = vld [vmem:[#allocation10 + $0x8f0] sm:$0xff]
    %v415 = vld [vmem:[#allocation10 + $0x8f8] sm:$0xff]
    %v416 = vld [vmem:[#allocation10 + $0x900] sm:$0xff]
    %v417 = vld [vmem:[#allocation10 + $0x908] sm:$0xff]
    %v418 = vld [vmem:[#allocation10 + $0x910] sm:$0xff]
    %v419 = vld [vmem:[#allocation10 + $0x918] sm:$0xff]
    %v420 = vld [vmem:[#allocation10 + $0x920] sm:$0xff]
    %v421 = vld [vmem:[#allocation10 + $0x928] sm:$0xff]
    %v422 = vld [vmem:[#allocation10 + $0x930] sm:$0xff]
    %v423 = vld [vmem:[#allocation10 + $0x938] sm:$0xff]
    %v424 = vld [vmem:[#allocation10 + $0x940] sm:$0xff]
    %v425 = vld [vmem:[#allocation10 + $0x948] sm:$0xff]
    %v426 = vld [vmem:[#allocation10 + $0x950] sm:$0xff]
    %v427 = vld [vmem:[#allocation10 + $0x958] sm:$0xff]
    %v428 = vld [vmem:[#allocation10 + $0x960] sm:$0xff]
    %v429 = vld [vmem:[#allocation10 + $0x968] sm:$0xff]
    %v430 = vld [vmem:[#allocation10 + $0x970] sm:$0xff]
    %v431 = vld [vmem:[#allocation10 + $0x978] sm:$0xff]
    %v432 = vld [vmem:[#allocation10 + $0x980] sm:$0xff]
    %v433 = vld [vmem:[#allocation10 + $0x988] sm:$0xff]
    %v434 = vld [vmem:[#allocation10 + $0x990] sm:$0xff]
    %v435 = vld [vmem:[#allocation10 + $0x998] sm:$0xff]
    %v436 = vld [vmem:[#allocation10 + $0x9a0] sm:$0xff]
    %v437 = vld [vmem:[#allocation10 + $0x9a8] sm:$0xff]
    %v438 = vld [vmem:[#allocation10 + $0x9b0] sm:$0xff]
    %v439 = vld [vmem:[#allocation10 + $0x9b8] sm:$0xff]
    %v440 = vld [vmem:[#allocation10 + $0x9c0] sm:$0xff]
    %v441 = vld [vmem:[#allocation10 + $0x9c8] sm:$0xff]
    %v442 = vld [vmem:[#allocation10 + $0x9d0] sm:$0xff]
    %v443 = vld [vmem:[#allocation10 + $0x9d8] sm:$0xff]
    %v444 = vld [vmem:[#allocation10 + $0x9e0] sm:$0xff]
    %v445 = vld [vmem:[#allocation10 + $0x9e8] sm:$0xff]
    %v446 = vld [vmem:[#allocation10 + $0x9f0] sm:$0xff]
    %v447 = vld [vmem:[#allocation10 + $0x9f8] sm:$0xff]
    %v448 = vld [vmem:[#allocation10 + $0xa00] sm:$0xff]
    %v449 = vld [vmem:[#allocation10 + $0xa08] sm:$0xff]
    %v450 = vld [vmem:[#allocation10 + $0xa10] sm:$0xff]
    %v451 = vld [vmem:[#allocation10 + $0xa18] sm:$0xff]
    %v452 = vld [vmem:[#allocation10 + $0xa20] sm:$0xff]
    %v453 = vld [vmem:[#allocation10 + $0xa28] sm:$0xff]
    %v454 = vld [vmem:[#allocation10 + $0xa30] sm:$0xff]
    %v455 = vld [vmem:[#allocation10 + $0xa38] sm:$0xff]
    %v456 = vld [vmem:[#allocation10 + $0xa40] sm:$0xff]
    %v457 = vld [vmem:[#allocation10 + $0xa48] sm:$0xff]
    %v458 = vld [vmem:[#allocation10 + $0xa50] sm:$0xff]
    %v459 = vld [vmem:[#allocation10 + $0xa58] sm:$0xff]
    %v460 = vld [vmem:[#allocation10 + $0xa60] sm:$0xff]
    %v461 = vld [vmem:[#allocation10 + $0xa68] sm:$0xff]
    %v462 = vld [vmem:[#allocation10 + $0xa70] sm:$0xff]
    %v463 = vld [vmem:[#allocation10 + $0xa78] sm:$0xff]
    %v464 = vld [vmem:[#allocation10 + $0xa80] sm:$0xff]
    %v465 = vld [vmem:[#allocation10 + $0xa88] sm:$0xff]
    %v466 = vld [vmem:[#allocation10 + $0xa90] sm:$0xff]
    %v467 = vld [vmem:[#allocation10 + $0xa98] sm:$0xff]
    %v468 = vld [vmem:[#allocation10 + $0xaa0] sm:$0xff]
    %v469 = vld [vmem:[#allocation10 + $0xaa8] sm:$0xff]
    %v470 = vld [vmem:[#allocation10 + $0xab0] sm:$0xff]
    %v471 = vld [vmem:[#allocation10 + $0xab8] sm:$0xff]
    %v472 = vld [vmem:[#allocation10 + $0xac0] sm:$0xff]
    %v473 = vld [vmem:[#allocation10 + $0xac8] sm:$0xff]
    %v474 = vld [vmem:[#allocation10 + $0xad0] sm:$0xff]
    %v475 = vld [vmem:[#allocation10 + $0xad8] sm:$0xff]
    %v476 = vld [vmem:[#allocation10 + $0xae0] sm:$0xff]
    %v477 = vld [vmem:[#allocation10 + $0xae8] sm:$0xff]
    %v478 = vld [vmem:[#allocation10 + $0xaf0] sm:$0xff]
    %v479 = vld [vmem:[#allocation10 + $0xaf8] sm:$0xff]
    %v480 = vld [vmem:[#allocation10 + $0xb00] sm:$0xff]
    %v481 = vld [vmem:[#allocation10 + $0xb08] sm:$0xff]
    %v482 = vld [vmem:[#allocation10 + $0xb10] sm:$0xff]
    %v483 = vld [vmem:[#allocation10 + $0xb18] sm:$0xff]
    %v484 = vld [vmem:[#allocation10 + $0xb20] sm:$0xff]
    %v485 = vld [vmem:[#allocation10 + $0xb28] sm:$0xff]
    %v486 = vld [vmem:[#allocation10 + $0xb30] sm:$0xff]
    %v487 = vld [vmem:[#allocation10 + $0xb38] sm:$0xff]
    %v488 = vld [vmem:[#allocation10 + $0xb40] sm:$0xff]
    %v489 = vld [vmem:[#allocation10 + $0xb48] sm:$0xff]
    %v490 = vld [vmem:[#allocation10 + $0xb50] sm:$0xff]
    %v491 = vld [vmem:[#allocation10 + $0xb58] sm:$0xff]
    %v492 = vld [vmem:[#allocation10 + $0xb60] sm:$0xff]
    %v493 = vld [vmem:[#allocation10 + $0xb68] sm:$0xff]
    %v494 = vld [vmem:[#allocation10 + $0xb70] sm:$0xff]
    %v495 = vld [vmem:[#allocation10 + $0xb78] sm:$0xff]
    %v496 = vld [vmem:[#allocation10 + $0xb80] sm:$0xff]
    %v497 = vld [vmem:[#allocation10 + $0xb88] sm:$0xff]
    %v498 = vld [vmem:[#allocation10 + $0xb90] sm:$0xff]
    %v499 = vld [vmem:[#allocation10 + $0xb98] sm:$0xff]
    %v500 = vld [vmem:[#allocation10 + $0xba0] sm:$0xff]
    %v501 = vld [vmem:[#allocation10 + $0xba8] sm:$0xff]
    %v502 = vld [vmem:[#allocation10 + $0xbb0] sm:$0xff]
    %v503 = vld [vmem:[#allocation10 + $0xbb8] sm:$0xff]
    %v504 = vld [vmem:[#allocation10 + $0xbc0] sm:$0xff]
    %v505 = vld [vmem:[#allocation10 + $0xbc8] sm:$0xff]
    %v506 = vld [vmem:[#allocation10 + $0xbd0] sm:$0xff]
    %v507 = vld [vmem:[#allocation10 + $0xbd8] sm:$0xff]
    %v508 = vld [vmem:[#allocation10 + $0xbe0] sm:$0xff]
    %v509 = vld [vmem:[#allocation10 + $0xbe8] sm:$0xff]
    %v510 = vld [vmem:[#allocation10 + $0xbf0] sm:$0xff]
    %v511 = vld [vmem:[#allocation10 + $0xbf8] sm:$0xff]
    %v512 = vld [vmem:[#allocation10 + $0xc00] sm:$0xff]
    %v513 = vld [vmem:[#allocation10 + $0xc08] sm:$0xff]
    %v514 = vld [vmem:[#allocation10 + $0xc10] sm:$0xff]
    %v515 = vld [vmem:[#allocation10 + $0xc18] sm:$0xff]
    %v516 = vld [vmem:[#allocation10 + $0xc20] sm:$0xff]
    %v517 = vld [vmem:[#allocation10 + $0xc28] sm:$0xff]
    %v518 = vld [vmem:[#allocation10 + $0xc30] sm:$0xff]
    %v519 = vld [vmem:[#allocation10 + $0xc38] sm:$0xff]
    %v520 = vld [vmem:[#allocation10 + $0xc40] sm:$0xff]
    %v521 = vld [vmem:[#allocation10 + $0xc48] sm:$0xff]
    %v522 = vld [vmem:[#allocation10 + $0xc50] sm:$0xff]
    %v523 = vld [vmem:[#allocation10 + $0xc58] sm:$0xff]
    %v524 = vld [vmem:[#allocation10 + $0xc60] sm:$0xff]
    %v525 = vld [vmem:[#allocation10 + $0xc68] sm:$0xff]
    %v526 = vld [vmem:[#allocation10 + $0xc70] sm:$0xff]
    %v527 = vld [vmem:[#allocation10 + $0xc78] sm:$0xff]
    %v528 = vld [vmem:[#allocation10 + $0xc80] sm:$0xff]
    %v529 = vld [vmem:[#allocation10 + $0xc88] sm:$0xff]
    %v530 = vld [vmem:[#allocation10 + $0xc90] sm:$0xff]
    %v531 = vld [vmem:[#allocation10 + $0xc98] sm:$0xff]
    %v532 = vld [vmem:[#allocation10 + $0xca0] sm:$0xff]
    %v533 = vld [vmem:[#allocation10 + $0xca8] sm:$0xff]
    %v534 = vld [vmem:[#allocation10 + $0xcb0] sm:$0xff]
    %v535 = vld [vmem:[#allocation10 + $0xcb8] sm:$0xff]
    %v536 = vld [vmem:[#allocation10 + $0xcc0] sm:$0xff]
    %v537 = vld [vmem:[#allocation10 + $0xcc8] sm:$0xff]
    %v538 = vld [vmem:[#allocation10 + $0xcd0] sm:$0xff]
    %v539 = vld [vmem:[#allocation10 + $0xcd8] sm:$0xff]
    %v540 = vld [vmem:[#allocation10 + $0xce0] sm:$0xff]
    %v541 = vld [vmem:[#allocation10 + $0xce8] sm:$0xff]
    %v542 = vld [vmem:[#allocation10 + $0xcf0] sm:$0xff]
    %v543 = vld [vmem:[#allocation10 + $0xcf8] sm:$0xff]
    %v544 = vld [vmem:[#allocation10 + $0xd00] sm:$0xff]
    %v545 = vld [vmem:[#allocation10 + $0xd08] sm:$0xff]
    %v546 = vld [vmem:[#allocation10 + $0xd10] sm:$0xff]
    %v547 = vld [vmem:[#allocation10 + $0xd18] sm:$0xff]
    %v548 = vld [vmem:[#allocation10 + $0xd20] sm:$0xff]
    %v549 = vld [vmem:[#allocation10 + $0xd28] sm:$0xff]
    %v550 = vld [vmem:[#allocation10 + $0xd30] sm:$0xff]
    %v551 = vld [vmem:[#allocation10 + $0xd38] sm:$0xff]
    %v552 = vld [vmem:[#allocation10 + $0xd40] sm:$0xff]
    %v553 = vld [vmem:[#allocation10 + $0xd48] sm:$0xff]
    %v554 = vld [vmem:[#allocation10 + $0xd50] sm:$0xff]
    %v555 = vld [vmem:[#allocation10 + $0xd58] sm:$0xff]
    %v556 = vld [vmem:[#allocation10 + $0xd60] sm:$0xff]
    %v557 = vld [vmem:[#allocation10 + $0xd68] sm:$0xff]
    %v558 = vld [vmem:[#allocation10 + $0xd70] sm:$0xff]
    %v559 = vld [vmem:[#allocation10 + $0xd78] sm:$0xff]
    %v560 = vld [vmem:[#allocation10 + $0xd80] sm:$0xff]
    %v561 = vld [vmem:[#allocation10 + $0xd88] sm:$0xff]
    %v562 = vld [vmem:[#allocation10 + $0xd90] sm:$0xff]
    %v563 = vld [vmem:[#allocation10 + $0xd98] sm:$0xff]
    %v564 = vld [vmem:[#allocation10 + $0xda0] sm:$0xff]
    %v565 = vld [vmem:[#allocation10 + $0xda8] sm:$0xff]
    %v566 = vld [vmem:[#allocation10 + $0xdb0] sm:$0xff]
    %v567 = vld [vmem:[#allocation10 + $0xdb8] sm:$0xff]
    %v568 = vld [vmem:[#allocation10 + $0xdc0] sm:$0xff]
    %v569 = vld [vmem:[#allocation10 + $0xdc8] sm:$0xff]
    %v570 = vld [vmem:[#allocation10 + $0xdd0] sm:$0xff]
    %v571 = vld [vmem:[#allocation10 + $0xdd8] sm:$0xff]
    %v572 = vld [vmem:[#allocation10 + $0xde0] sm:$0xff]
    %v573 = vld [vmem:[#allocation10 + $0xde8] sm:$0xff]
    %v574 = vld [vmem:[#allocation10 + $0xdf0] sm:$0xff]
    %v575 = vld [vmem:[#allocation10 + $0xdf8] sm:$0xff]
    %v576 = vld [vmem:[#allocation10 + $0xe00] sm:$0xff]
    %v577 = vld [vmem:[#allocation10 + $0xe08] sm:$0xff]
    %v578 = vld [vmem:[#allocation10 + $0xe10] sm:$0xff]
    %v579 = vld [vmem:[#allocation10 + $0xe18] sm:$0xff]
    %v580 = vld [vmem:[#allocation10 + $0xe20] sm:$0xff]
    %v581 = vld [vmem:[#allocation10 + $0xe28] sm:$0xff]
    %v582 = vld [vmem:[#allocation10 + $0xe30] sm:$0xff]
    %v583 = vld [vmem:[#allocation10 + $0xe38] sm:$0xff]
    %v584 = vld [vmem:[#allocation10 + $0xe40] sm:$0xff]
    %v585 = vld [vmem:[#allocation10 + $0xe48] sm:$0xff]
    %v586 = vld [vmem:[#allocation10 + $0xe50] sm:$0xff]
    %v587 = vld [vmem:[#allocation10 + $0xe58] sm:$0xff]
    %v588 = vld [vmem:[#allocation10 + $0xe60] sm:$0xff]
    %v589 = vld [vmem:[#allocation10 + $0xe68] sm:$0xff]
    %v590 = vld [vmem:[#allocation10 + $0xe70] sm:$0xff]
    %v591 = vld [vmem:[#allocation10 + $0xe78] sm:$0xff]
    %v592 = vld [vmem:[#allocation10 + $0xe80] sm:$0xff]
    %v593 = vld [vmem:[#allocation10 + $0xe88] sm:$0xff]
    %v594 = vld [vmem:[#allocation10 + $0xe90] sm:$0xff]
    %v595 = vld [vmem:[#allocation10 + $0xe98] sm:$0xff]
    %v596 = vld [vmem:[#allocation10 + $0xea0] sm:$0xff]
    %v597 = vld [vmem:[#allocation10 + $0xea8] sm:$0xff]
    %v598 = vld [vmem:[#allocation10 + $0xeb0] sm:$0xff]
    %v599 = vld [vmem:[#allocation10 + $0xeb8] sm:$0xff]
    %v600 = vld [vmem:[#allocation10 + $0xec0] sm:$0xff]
    %v601 = vld [vmem:[#allocation10 + $0xec8] sm:$0xff]
    %v602 = vld [vmem:[#allocation10 + $0xed0] sm:$0xff]
    %v603 = vld [vmem:[#allocation10 + $0xed8] sm:$0xff]
    %v604 = vld [vmem:[#allocation10 + $0xee0] sm:$0xff]
    %v605 = vld [vmem:[#allocation10 + $0xee8] sm:$0xff]
    %v606 = vld [vmem:[#allocation10 + $0xef0] sm:$0xff]
    %v607 = vld [vmem:[#allocation10 + $0xef8] sm:$0xff]
    %v608 = vld [vmem:[#allocation4] sm:$0xff]
    %v609 = vld [vmem:[#allocation4 + $0x8] sm:$0xff]
    %v610 = vld [vmem:[#allocation7] sm:$0xff]
    %v611 = vld [vmem:[#allocation7 + $0x8] sm:$0xff]
    %612 = vmatpush.msra.mxu0 %v363
    %613 = vmatpush.msra.mxu0 %v358
    %614 = vmatpush.msra.mxu0 %v353
    %615 = vmatpush.msra.mxu0 %v348
    %616 = vmatpush.msra.mxu0 %v343
    %617 = vmatpush.msra.mxu0 %v338
    %618 = vmatpush.msra.mxu0 %v333
    %619 = vmatpush.msra.mxu0 %v328
    %620 = vmatpush.msra.mxu0 %v323
    %621 = vmatpush.msra.mxu0 %v318
    %622 = vmatpush.msra.mxu0 %v313
    %623 = vmatpush.msra.mxu0 %v308
    %624 = vmatpush.msra.mxu0 %v303
    %625 = vmatpush.msra.mxu0 %v298
    %626 = vmatpush.msra.mxu0 %v293
    %627 = vmatpush.msra.mxu0 %v288
    %628 = vmatmul.f32.gmra.mxu0 %v610
    %v629 = vpop.f32.mrf.mxu0
    %v630 = vadd.f32 0.0, %v629
    %631 = vdwg.mxu0
    %632 = vmatpush.msra.mxu0 %v443
    %633 = vmatpush.msra.mxu0 %v438
    %634 = vmatpush.msra.mxu0 %v433
    %635 = vmatpush.msra.mxu0 %v428
    %636 = vmatpush.msra.mxu0 %v423
    %637 = vmatpush.msra.mxu0 %v418
    %638 = vmatpush.msra.mxu0 %v413
    %639 = vmatpush.msra.mxu0 %v408
    %640 = vmatpush.msra.mxu0 %v403
    %641 = vmatpush.msra.mxu0 %v398
    %642 = vmatpush.msra.mxu0 %v393
    %643 = vmatpush.msra.mxu0 %v388
    %644 = vmatpush.msra.mxu0 %v383
    %645 = vmatpush.msra.mxu0 %v378
    %646 = vmatpush.msra.mxu0 %v373
    %647 = vmatpush.msra.mxu0 %v368
    %648 = vmatmul.f32.gmra.mxu0 %v611
    %v649 = vpop.f32.mrf.mxu0
    %v650 = vadd.f32 %v630, %v649
    %651 = vdwg.mxu0
    %652 = vmatpush.msra.mxu0 %v364
    %653 = vmatpush.msra.mxu0 %v359
    %654 = vmatpush.msra.mxu0 %v354
    %655 = vmatpush.msra.mxu0 %v349
    %656 = vmatpush.msra.mxu0 %v344
    %657 = vmatpush.msra.mxu0 %v339
    %658 = vmatpush.msra.mxu0 %v334
    %659 = vmatpush.msra.mxu0 %v329
    %660 = vmatpush.msra.mxu0 %v324
    %661 = vmatpush.msra.mxu0 %v319
    %662 = vmatpush.msra.mxu0 %v314
    %663 = vmatpush.msra.mxu0 %v309
    %664 = vmatpush.msra.mxu0 %v304
    %665 = vmatpush.msra.mxu0 %v299
    %666 = vmatpush.msra.mxu0 %v294
    %667 = vmatpush.msra.mxu0 %v289
    %668 = vmatmul.f32.gmra.mxu0 %v610
    %v669 = vpop.f32.mrf.mxu0
    %v670 = vadd.f32 0.0, %v669
    %671 = vdwg.mxu0
    %672 = vmatpush.msra.mxu0 %v444
    %673 = vmatpush.msra.mxu0 %v439
    %674 = vmatpush.msra.mxu0 %v434
    %675 = vmatpush.msra.mxu0 %v429
    %676 = vmatpush.msra.mxu0 %v424
    %677 = vmatpush.msra.mxu0 %v419
    %678 = vmatpush.msra.mxu0 %v414
    %679 = vmatpush.msra.mxu0 %v409
    %680 = vmatpush.msra.mxu0 %v404
    %681 = vmatpush.msra.mxu0 %v399
    %682 = vmatpush.msra.mxu0 %v394
    %683 = vmatpush.msra.mxu0 %v389
    %684 = vmatpush.msra.mxu0 %v384
    %685 = vmatpush.msra.mxu0 %v379
    %686 = vmatpush.msra.mxu0 %v374
    %687 = vmatpush.msra.mxu0 %v369
    %688 = vmatmul.f32.gmra.mxu0 %v611
    %v689 = vpop.f32.mrf.mxu0
    %v690 = vadd.f32 %v670, %v689
    %691 = vdwg.mxu0
    %692 = vmatpush.msra.mxu0 %v365
    %693 = vmatpush.msra.mxu0 %v360
    %694 = vmatpush.msra.mxu0 %v355
    %695 = vmatpush.msra.mxu0 %v350
    %696 = vmatpush.msra.mxu0 %v345
    %697 = vmatpush.msra.mxu0 %v340
    %698 = vmatpush.msra.mxu0 %v335
    %699 = vmatpush.msra.mxu0 %v330
    %700 = vmatpush.msra.mxu0 %v325
    %701 = vmatpush.msra.mxu0 %v320
    %702 = vmatpush.msra.mxu0 %v315
    %703 = vmatpush.msra.mxu0 %v310
    %704 = vmatpush.msra.mxu0 %v305
    %705 = vmatpush.msra.mxu0 %v300
    %706 = vmatpush.msra.mxu0 %v295
    %707 = vmatpush.msra.mxu0 %v290
    %708 = vmatmul.f32.gmra.mxu0 %v610
    %v709 = vpop.f32.mrf.mxu0
    %v710 = vadd.f32 0.0, %v709
    %711 = vdwg.mxu0
    %712 = vmatpush.msra.mxu0 %v445
    %713 = vmatpush.msra.mxu0 %v440
    %714 = vmatpush.msra.mxu0 %v435
    %715 = vmatpush.msra.mxu0 %v430
    %716 = vmatpush.msra.mxu0 %v425
    %717 = vmatpush.msra.mxu0 %v420
    %718 = vmatpush.msra.mxu0 %v415
    %719 = vmatpush.msra.mxu0 %v410
    %720 = vmatpush.msra.mxu0 %v405
    %721 = vmatpush.msra.mxu0 %v400
    %722 = vmatpush.msra.mxu0 %v395
    %723 = vmatpush.msra.mxu0 %v390
    %724 = vmatpush.msra.mxu0 %v385
    %725 = vmatpush.msra.mxu0 %v380
    %726 = vmatpush.msra.mxu0 %v375
    %727 = vmatpush.msra.mxu0 %v370
    %728 = vmatmul.f32.gmra.mxu0 %v611
    %v729 = vpop.f32.mrf.mxu0
    %v730 = vadd.f32 %v710, %v729
    %731 = vdwg.mxu0
    %732 = vmatpush.msra.mxu0 %v366
    %733 = vmatpush.msra.mxu0 %v361
    %734 = vmatpush.msra.mxu0 %v356
    %735 = vmatpush.msra.mxu0 %v351
    %736 = vmatpush.msra.mxu0 %v346
    %737 = vmatpush.msra.mxu0 %v341
    %738 = vmatpush.msra.mxu0 %v336
    %739 = vmatpush.msra.mxu0 %v331
    %740 = vmatpush.msra.mxu0 %v326
    %741 = vmatpush.msra.mxu0 %v321
    %742 = vmatpush.msra.mxu0 %v316
    %743 = vmatpush.msra.mxu0 %v311
    %744 = vmatpush.msra.mxu0 %v306
    %745 = vmatpush.msra.mxu0 %v301
    %746 = vmatpush.msra.mxu0 %v296
    %747 = vmatpush.msra.mxu0 %v291
    %748 = vmatmul.f32.gmra.mxu0 %v610
    %v749 = vpop.f32.mrf.mxu0
    %v750 = vadd.f32 0.0, %v749
    %751 = vdwg.mxu0
    %752 = vmatpush.msra.mxu0 %v446
    %753 = vmatpush.msra.mxu0 %v441
    %754 = vmatpush.msra.mxu0 %v436
    %755 = vmatpush.msra.mxu0 %v431
    %756 = vmatpush.msra.mxu0 %v426
    %757 = vmatpush.msra.mxu0 %v421
    %758 = vmatpush.msra.mxu0 %v416
    %759 = vmatpush.msra.mxu0 %v411
    %760 = vmatpush.msra.mxu0 %v406
    %761 = vmatpush.msra.mxu0 %v401
    %762 = vmatpush.msra.mxu0 %v396
    %763 = vmatpush.msra.mxu0 %v391
    %764 = vmatpush.msra.mxu0 %v386
    %765 = vmatpush.msra.mxu0 %v381
    %766 = vmatpush.msra.mxu0 %v376
    %767 = vmatpush.msra.mxu0 %v371
    %768 = vmatmul.f32.gmra.mxu0 %v611
    %v769 = vpop.f32.mrf.mxu0
    %v770 = vadd.f32 %v750, %v769
    %771 = vdwg.mxu0
    %772 = vmatpush.msra.mxu0 %v367
    %773 = vmatpush.msra.mxu0 %v362
    %774 = vmatpush.msra.mxu0 %v357
    %775 = vmatpush.msra.mxu0 %v352
    %776 = vmatpush.msra.mxu0 %v347
    %777 = vmatpush.msra.mxu0 %v342
    %778 = vmatpush.msra.mxu0 %v337
    %779 = vmatpush.msra.mxu0 %v332
    %780 = vmatpush.msra.mxu0 %v327
    %781 = vmatpush.msra.mxu0 %v322
    %782 = vmatpush.msra.mxu0 %v317
    %783 = vmatpush.msra.mxu0 %v312
    %784 = vmatpush.msra.mxu0 %v307
    %785 = vmatpush.msra.mxu0 %v302
    %786 = vmatpush.msra.mxu0 %v297
    %787 = vmatpush.msra.mxu0 %v292
    %788 = vmatmul.f32.gmra.mxu0 %v610
    %v789 = vpop.f32.mrf.mxu0
    %v790 = vadd.f32 0.0, %v789
    %791 = vdwg.mxu0
    %792 = vmatpush.msra.mxu0 %v447
    %793 = vmatpush.msra.mxu0 %v442
    %794 = vmatpush.msra.mxu0 %v437
    %795 = vmatpush.msra.mxu0 %v432
    %796 = vmatpush.msra.mxu0 %v427
    %797 = vmatpush.msra.mxu0 %v422
    %798 = vmatpush.msra.mxu0 %v417
    %799 = vmatpush.msra.mxu0 %v412
    %800 = vmatpush.msra.mxu0 %v407
    %801 = vmatpush.msra.mxu0 %v402
    %802 = vmatpush.msra.mxu0 %v397
    %803 = vmatpush.msra.mxu0 %v392
    %804 = vmatpush.msra.mxu0 %v387
    %805 = vmatpush.msra.mxu0 %v382
    %806 = vmatpush.msra.mxu0 %v377
    %807 = vmatpush.msra.mxu0 %v372
    %808 = vmatmul.f32.gmra.mxu0 %v611
    %v809 = vpop.f32.mrf.mxu0
    %v810 = vadd.f32 %v790, %v809
    %811 = vdwg.mxu0
    %812 = vmatpush.msra.mxu0 %v203
    %813 = vmatpush.msra.mxu0 %v198
    %814 = vmatpush.msra.mxu0 %v193
    %815 = vmatpush.msra.mxu0 %v188
    %816 = vmatpush.msra.mxu0 %v183
    %817 = vmatpush.msra.mxu0 %v178
    %818 = vmatpush.msra.mxu0 %v173
    %819 = vmatpush.msra.mxu0 %v168
    %820 = vmatpush.msra.mxu0 %v163
    %821 = vmatpush.msra.mxu0 %v158
    %822 = vmatpush.msra.mxu0 %v153
    %823 = vmatpush.msra.mxu0 %v148
    %824 = vmatpush.msra.mxu0 %v143
    %825 = vmatpush.msra.mxu0 %v138
    %826 = vmatpush.msra.mxu0 %v133
    %827 = vmatpush.msra.mxu0 %v128
    %828 = vmatmul.f32.gmra.mxu0 %v608
    %v829 = vpop.f32.mrf.mxu0
    %v830 = vadd.f32 %v650, %v829
    %831 = vdwg.mxu0
    %832 = vmatpush.msra.mxu0 %v283
    %833 = vmatpush.msra.mxu0 %v278
    %834 = vmatpush.msra.mxu0 %v273
    %835 = vmatpush.msra.mxu0 %v268
    %836 = vmatpush.msra.mxu0 %v263
    %837 = vmatpush.msra.mxu0 %v258
    %838 = vmatpush.msra.mxu0 %v253
    %839 = vmatpush.msra.mxu0 %v248
    %840 = vmatpush.msra.mxu0 %v243
    %841 = vmatpush.msra.mxu0 %v238
    %842 = vmatpush.msra.mxu0 %v233
    %843 = vmatpush.msra.mxu0 %v228
    %844 = vmatpush.msra.mxu0 %v223
    %845 = vmatpush.msra.mxu0 %v218
    %846 = vmatpush.msra.mxu0 %v213
    %847 = vmatpush.msra.mxu0 %v208
    %848 = vmatmul.f32.gmra.mxu0 %v609
    %v849 = vpop.f32.mrf.mxu0
    %v850 = vadd.f32 %v830, %v849
    %851 = vdwg.mxu0
    %852 = vmatpush.msra.mxu0 %v204
    %853 = vmatpush.msra.mxu0 %v199
    %854 = vmatpush.msra.mxu0 %v194
    %855 = vmatpush.msra.mxu0 %v189
    %856 = vmatpush.msra.mxu0 %v184
    %857 = vmatpush.msra.mxu0 %v179
    %858 = vmatpush.msra.mxu0 %v174
    %859 = vmatpush.msra.mxu0 %v169
    %860 = vmatpush.msra.mxu0 %v164
    %861 = vmatpush.msra.mxu0 %v159
    %862 = vmatpush.msra.mxu0 %v154
    %863 = vmatpush.msra.mxu0 %v149
    %864 = vmatpush.msra.mxu0 %v144
    %865 = vmatpush.msra.mxu0 %v139
    %866 = vmatpush.msra.mxu0 %v134
    %867 = vmatpush.msra.mxu0 %v129
    %868 = vmatmul.f32.gmra.mxu0 %v608
    %v869 = vpop.f32.mrf.mxu0
    %v870 = vadd.f32 %v690, %v869
    %871 = vdwg.mxu0
    %872 = vmatpush.msra.mxu0 %v284
    %873 = vmatpush.msra.mxu0 %v279
    %874 = vmatpush.msra.mxu0 %v274
    %875 = vmatpush.msra.mxu0 %v269
    %876 = vmatpush.msra.mxu0 %v264
    %877 = vmatpush.msra.mxu0 %v259
    %878 = vmatpush.msra.mxu0 %v254
    %879 = vmatpush.msra.mxu0 %v249
    %880 = vmatpush.msra.mxu0 %v244
    %881 = vmatpush.msra.mxu0 %v239
    %882 = vmatpush.msra.mxu0 %v234
    %883 = vmatpush.msra.mxu0 %v229
    %884 = vmatpush.msra.mxu0 %v224
    %885 = vmatpush.msra.mxu0 %v219
    %886 = vmatpush.msra.mxu0 %v214
    %887 = vmatpush.msra.mxu0 %v209
    %888 = vmatmul.f32.gmra.mxu0 %v609
    %v889 = vpop.f32.mrf.mxu0
    %v890 = vadd.f32 %v870, %v889
    %891 = vdwg.mxu0
    %892 = vmatpush.msra.mxu0 %v205
    %893 = vmatpush.msra.mxu0 %v200
    %894 = vmatpush.msra.mxu0 %v195
    %895 = vmatpush.msra.mxu0 %v190
    %896 = vmatpush.msra.mxu0 %v185
    %897 = vmatpush.msra.mxu0 %v180
    %898 = vmatpush.msra.mxu0 %v175
    %899 = vmatpush.msra.mxu0 %v170
    %900 = vmatpush.msra.mxu0 %v165
    %901 = vmatpush.msra.mxu0 %v160
    %902 = vmatpush.msra.mxu0 %v155
    %903 = vmatpush.msra.mxu0 %v150
    %904 = vmatpush.msra.mxu0 %v145
    %905 = vmatpush.msra.mxu0 %v140
    %906 = vmatpush.msra.mxu0 %v135
    %907 = vmatpush.msra.mxu0 %v130
    %908 = vmatmul.f32.gmra.mxu0 %v608
    %v909 = vpop.f32.mrf.mxu0
    %v910 = vadd.f32 %v730, %v909
    %911 = vdwg.mxu0
    %912 = vmatpush.msra.mxu0 %v285
    %913 = vmatpush.msra.mxu0 %v280
    %914 = vmatpush.msra.mxu0 %v275
    %915 = vmatpush.msra.mxu0 %v270
    %916 = vmatpush.msra.mxu0 %v265
    %917 = vmatpush.msra.mxu0 %v260
    %918 = vmatpush.msra.mxu0 %v255
    %919 = vmatpush.msra.mxu0 %v250
    %920 = vmatpush.msra.mxu0 %v245
    %921 = vmatpush.msra.mxu0 %v240
    %922 = vmatpush.msra.mxu0 %v235
    %923 = vmatpush.msra.mxu0 %v230
    %924 = vmatpush.msra.mxu0 %v225
    %925 = vmatpush.msra.mxu0 %v220
    %926 = vmatpush.msra.mxu0 %v215
    %927 = vmatpush.msra.mxu0 %v210
    %928 = vmatmul.f32.gmra.mxu0 %v609
    %v929 = vpop.f32.mrf.mxu0
    %v930 = vadd.f32 %v910, %v929
    %931 = vdwg.mxu0
    %932 = vmatpush.msra.mxu0 %v206
    %933 = vmatpush.msra.mxu0 %v201
    %934 = vmatpush.msra.mxu0 %v196
    %935 = vmatpush.msra.mxu0 %v191
    %936 = vmatpush.msra.mxu0 %v186
    %937 = vmatpush.msra.mxu0 %v181
    %938 = vmatpush.msra.mxu0 %v176
    %939 = vmatpush.msra.mxu0 %v171
    %940 = vmatpush.msra.mxu0 %v166
    %941 = vmatpush.msra.mxu0 %v161
    %942 = vmatpush.msra.mxu0 %v156
    %943 = vmatpush.msra.mxu0 %v151
    %944 = vmatpush.msra.mxu0 %v146
    %945 = vmatpush.msra.mxu0 %v141
    %946 = vmatpush.msra.mxu0 %v136
    %947 = vmatpush.msra.mxu0 %v131
    %948 = vmatmul.f32.gmra.mxu0 %v608
    %v949 = vpop.f32.mrf.mxu0
    %v950 = vadd.f32 %v770, %v949
    %951 = vdwg.mxu0
    %952 = vmatpush.msra.mxu0 %v286
    %953 = vmatpush.msra.mxu0 %v281
    %954 = vmatpush.msra.mxu0 %v276
    %955 = vmatpush.msra.mxu0 %v271
    %956 = vmatpush.msra.mxu0 %v266
    %957 = vmatpush.msra.mxu0 %v261
    %958 = vmatpush.msra.mxu0 %v256
    %959 = vmatpush.msra.mxu0 %v251
    %960 = vmatpush.msra.mxu0 %v246
    %961 = vmatpush.msra.mxu0 %v241
    %962 = vmatpush.msra.mxu0 %v236
    %963 = vmatpush.msra.mxu0 %v231
    %964 = vmatpush.msra.mxu0 %v226
    %965 = vmatpush.msra.mxu0 %v221
    %966 = vmatpush.msra.mxu0 %v216
    %967 = vmatpush.msra.mxu0 %v211
    %968 = vmatmul.f32.gmra.mxu0 %v609
    %v969 = vpop.f32.mrf.mxu0
    %v970 = vadd.f32 %v950, %v969
    %971 = vdwg.mxu0
    %972 = vmatpush.msra.mxu0 %v207
    %973 = vmatpush.msra.mxu0 %v202
    %974 = vmatpush.msra.mxu0 %v197
    %975 = vmatpush.msra.mxu0 %v192
    %976 = vmatpush.msra.mxu0 %v187
    %977 = vmatpush.msra.mxu0 %v182
    %978 = vmatpush.msra.mxu0 %v177
    %979 = vmatpush.msra.mxu0 %v172
    %980 = vmatpush.msra.mxu0 %v167
    %981 = vmatpush.msra.mxu0 %v162
    %982 = vmatpush.msra.mxu0 %v157
    %983 = vmatpush.msra.mxu0 %v152
    %984 = vmatpush.msra.mxu0 %v147
    %985 = vmatpush.msra.mxu0 %v142
    %986 = vmatpush.msra.mxu0 %v137
    %987 = vmatpush.msra.mxu0 %v132
    %988 = vmatmul.f32.gmra.mxu0 %v608
    %v989 = vpop.f32.mrf.mxu0
    %v990 = vadd.f32 %v810, %v989
    %991 = vdwg.mxu0
    %992 = vmatpush.msra.mxu0 %v287
    %993 = vmatpush.msra.mxu0 %v282
    %994 = vmatpush.msra.mxu0 %v277
    %995 = vmatpush.msra.mxu0 %v272
    %996 = vmatpush.msra.mxu0 %v267
    %997 = vmatpush.msra.mxu0 %v262
    %998 = vmatpush.msra.mxu0 %v257
    %999 = vmatpush.msra.mxu0 %v252
    %1000 = vmatpush.msra.mxu0 %v247
    %1001 = vmatpush.msra.mxu0 %v242
    %1002 = vmatpush.msra.mxu0 %v237
    %1003 = vmatpush.msra.mxu0 %v232
    %1004 = vmatpush.msra.mxu0 %v227
    %1005 = vmatpush.msra.mxu0 %v222
    %1006 = vmatpush.msra.mxu0 %v217
    %1007 = vmatpush.msra.mxu0 %v212
    %1008 = vmatmul.f32.gmra.mxu0 %v609
    %v1009 = vpop.f32.mrf.mxu0
    %v1010 = vadd.f32 %v990, %v1009
    %1011 = vdwg.mxu0
    %v1012 = vld [vmem:[#allocation9] sm:$0xff]
    %v1013 = vld [vmem:[#allocation9 + $0x8] sm:$0xff]
    %1014 = vmatpush.msra.mxu0 %v523
    %1015 = vmatpush.msra.mxu0 %v518
    %1016 = vmatpush.msra.mxu0 %v513
    %1017 = vmatpush.msra.mxu0 %v508
    %1018 = vmatpush.msra.mxu0 %v503
    %1019 = vmatpush.msra.mxu0 %v498
    %1020 = vmatpush.msra.mxu0 %v493
    %1021 = vmatpush.msra.mxu0 %v488
    %1022 = vmatpush.msra.mxu0 %v483
    %1023 = vmatpush.msra.mxu0 %v478
    %1024 = vmatpush.msra.mxu0 %v473
    %1025 = vmatpush.msra.mxu0 %v468
    %1026 = vmatpush.msra.mxu0 %v463
    %1027 = vmatpush.msra.mxu0 %v458
    %1028 = vmatpush.msra.mxu0 %v453
    %1029 = vmatpush.msra.mxu0 %v448
    %1030 = vmatmul.f32.gmra.mxu0 %v1012
    %v1031 = vpop.f32.mrf.mxu0
    %v1032 = vadd.f32 0.0, %v1031
    %1033 = vdwg.mxu0
    %1034 = vmatpush.msra.mxu0 %v603
    %1035 = vmatpush.msra.mxu0 %v598
    %1036 = vmatpush.msra.mxu0 %v593
    %1037 = vmatpush.msra.mxu0 %v588
    %1038 = vmatpush.msra.mxu0 %v583
    %1039 = vmatpush.msra.mxu0 %v578
    %1040 = vmatpush.msra.mxu0 %v573
    %1041 = vmatpush.msra.mxu0 %v568
    %1042 = vmatpush.msra.mxu0 %v563
    %1043 = vmatpush.msra.mxu0 %v558
    %1044 = vmatpush.msra.mxu0 %v553
    %1045 = vmatpush.msra.mxu0 %v548
    %1046 = vmatpush.msra.mxu0 %v543
    %1047 = vmatpush.msra.mxu0 %v538
    %1048 = vmatpush.msra.mxu0 %v533
    %1049 = vmatpush.msra.mxu0 %v528
    %1050 = vmatmul.f32.gmra.mxu0 %v1013
    %v1051 = vpop.f32.mrf.mxu0
    %v1052 = vadd.f32 %v1032, %v1051
    %1053 = vdwg.mxu0
    %1054 = vmatpush.msra.mxu0 %v524
    %1055 = vmatpush.msra.mxu0 %v519
    %1056 = vmatpush.msra.mxu0 %v514
    %1057 = vmatpush.msra.mxu0 %v509
    %1058 = vmatpush.msra.mxu0 %v504
    %1059 = vmatpush.msra.mxu0 %v499
    %1060 = vmatpush.msra.mxu0 %v494
    %1061 = vmatpush.msra.mxu0 %v489
    %1062 = vmatpush.msra.mxu0 %v484
    %1063 = vmatpush.msra.mxu0 %v479
    %1064 = vmatpush.msra.mxu0 %v474
    %1065 = vmatpush.msra.mxu0 %v469
    %1066 = vmatpush.msra.mxu0 %v464
    %1067 = vmatpush.msra.mxu0 %v459
    %1068 = vmatpush.msra.mxu0 %v454
    %1069 = vmatpush.msra.mxu0 %v449
    %1070 = vmatmul.f32.gmra.mxu0 %v1012
    %v1071 = vpop.f32.mrf.mxu0
    %v1072 = vadd.f32 0.0, %v1071
    %1073 = vdwg.mxu0
    %1074 = vmatpush.msra.mxu0 %v604
    %1075 = vmatpush.msra.mxu0 %v599
    %1076 = vmatpush.msra.mxu0 %v594
    %1077 = vmatpush.msra.mxu0 %v589
    %1078 = vmatpush.msra.mxu0 %v584
    %1079 = vmatpush.msra.mxu0 %v579
    %1080 = vmatpush.msra.mxu0 %v574
    %1081 = vmatpush.msra.mxu0 %v569
    %1082 = vmatpush.msra.mxu0 %v564
    %1083 = vmatpush.msra.mxu0 %v559
    %1084 = vmatpush.msra.mxu0 %v554
    %1085 = vmatpush.msra.mxu0 %v549
    %1086 = vmatpush.msra.mxu0 %v544
    %1087 = vmatpush.msra.mxu0 %v539
    %1088 = vmatpush.msra.mxu0 %v534
    %1089 = vmatpush.msra.mxu0 %v529
    %1090 = vmatmul.f32.gmra.mxu0 %v1013
    %v1091 = vpop.f32.mrf.mxu0
    %v1092 = vadd.f32 %v1072, %v1091
    %1093 = vdwg.mxu0
    %1094 = vmatpush.msra.mxu0 %v525
    %1095 = vmatpush.msra.mxu0 %v520
    %1096 = vmatpush.msra.mxu0 %v515
    %1097 = vmatpush.msra.mxu0 %v510
    %1098 = vmatpush.msra.mxu0 %v505
    %1099 = vmatpush.msra.mxu0 %v500
    %1100 = vmatpush.msra.mxu0 %v495
    %1101 = vmatpush.msra.mxu0 %v490
    %1102 = vmatpush.msra.mxu0 %v485
    %1103 = vmatpush.msra.mxu0 %v480
    %1104 = vmatpush.msra.mxu0 %v475
    %1105 = vmatpush.msra.mxu0 %v470
    %1106 = vmatpush.msra.mxu0 %v465
    %1107 = vmatpush.msra.mxu0 %v460
    %1108 = vmatpush.msra.mxu0 %v455
    %1109 = vmatpush.msra.mxu0 %v450
    %1110 = vmatmul.f32.gmra.mxu0 %v1012
    %v1111 = vpop.f32.mrf.mxu0
    %v1112 = vadd.f32 0.0, %v1111
    %1113 = vdwg.mxu0
    %1114 = vmatpush.msra.mxu0 %v605
    %1115 = vmatpush.msra.mxu0 %v600
    %1116 = vmatpush.msra.mxu0 %v595
    %1117 = vmatpush.msra.mxu0 %v590
    %1118 = vmatpush.msra.mxu0 %v585
    %1119 = vmatpush.msra.mxu0 %v580
    %1120 = vmatpush.msra.mxu0 %v575
    %1121 = vmatpush.msra.mxu0 %v570
    %1122 = vmatpush.msra.mxu0 %v565
    %1123 = vmatpush.msra.mxu0 %v560
    %1124 = vmatpush.msra.mxu0 %v555
    %1125 = vmatpush.msra.mxu0 %v550
    %1126 = vmatpush.msra.mxu0 %v545
    %1127 = vmatpush.msra.mxu0 %v540
    %1128 = vmatpush.msra.mxu0 %v535
    %1129 = vmatpush.msra.mxu0 %v530
    %1130 = vmatmul.f32.gmra.mxu0 %v1013
    %v1131 = vpop.f32.mrf.mxu0
    %v1132 = vadd.f32 %v1112, %v1131
    %1133 = vdwg.mxu0
    %1134 = vmatpush.msra.mxu0 %v526
    %1135 = vmatpush.msra.mxu0 %v521
    %1136 = vmatpush.msra.mxu0 %v516
    %1137 = vmatpush.msra.mxu0 %v511
    %1138 = vmatpush.msra.mxu0 %v506
    %1139 = vmatpush.msra.mxu0 %v501
    %1140 = vmatpush.msra.mxu0 %v496
    %1141 = vmatpush.msra.mxu0 %v491
    %1142 = vmatpush.msra.mxu0 %v486
    %1143 = vmatpush.msra.mxu0 %v481
    %1144 = vmatpush.msra.mxu0 %v476
    %1145 = vmatpush.msra.mxu0 %v471
    %1146 = vmatpush.msra.mxu0 %v466
    %1147 = vmatpush.msra.mxu0 %v461
    %1148 = vmatpush.msra.mxu0 %v456
    %1149 = vmatpush.msra.mxu0 %v451
    %1150 = vmatmul.f32.gmra.mxu0 %v1012
    %v1151 = vpop.f32.mrf.mxu0
    %v1152 = vadd.f32 0.0, %v1151
    %1153 = vdwg.mxu0
    %1154 = vmatpush.msra.mxu0 %v606
    %1155 = vmatpush.msra.mxu0 %v601
    %1156 = vmatpush.msra.mxu0 %v596
    %1157 = vmatpush.msra.mxu0 %v591
    %1158 = vmatpush.msra.mxu0 %v586
    %1159 = vmatpush.msra.mxu0 %v581
    %1160 = vmatpush.msra.mxu0 %v576
    %1161 = vmatpush.msra.mxu0 %v571
    %1162 = vmatpush.msra.mxu0 %v566
    %1163 = vmatpush.msra.mxu0 %v561
    %1164 = vmatpush.msra.mxu0 %v556
    %1165 = vmatpush.msra.mxu0 %v551
    %1166 = vmatpush.msra.mxu0 %v546
    %1167 = vmatpush.msra.mxu0 %v541
    %1168 = vmatpush.msra.mxu0 %v536
    %1169 = vmatpush.msra.mxu0 %v531
    %1170 = vmatmul.f32.gmra.mxu0 %v1013
    %v1171 = vpop.f32.mrf.mxu0
    %v1172 = vadd.f32 %v1152, %v1171
    %1173 = vdwg.mxu0
    %1174 = vmatpush.msra.mxu0 %v527
    %1175 = vmatpush.msra.mxu0 %v522
    %1176 = vmatpush.msra.mxu0 %v517
    %1177 = vmatpush.msra.mxu0 %v512
    %1178 = vmatpush.msra.mxu0 %v507
    %1179 = vmatpush.msra.mxu0 %v502
    %1180 = vmatpush.msra.mxu0 %v497
    %1181 = vmatpush.msra.mxu0 %v492
    %1182 = vmatpush.msra.mxu0 %v487
    %1183 = vmatpush.msra.mxu0 %v482
    %1184 = vmatpush.msra.mxu0 %v477
    %1185 = vmatpush.msra.mxu0 %v472
    %1186 = vmatpush.msra.mxu0 %v467
    %1187 = vmatpush.msra.mxu0 %v462
    %1188 = vmatpush.msra.mxu0 %v457
    %1189 = vmatpush.msra.mxu0 %v452
    %1190 = vmatmul.f32.gmra.mxu0 %v1012
    %v1191 = vpop.f32.mrf.mxu0
    %v1192 = vadd.f32 0.0, %v1191
    %1193 = vdwg.mxu0
    %1194 = vmatpush.msra.mxu0 %v607
    %1195 = vmatpush.msra.mxu0 %v602
    %1196 = vmatpush.msra.mxu0 %v597
    %1197 = vmatpush.msra.mxu0 %v592
    %1198 = vmatpush.msra.mxu0 %v587
    %1199 = vmatpush.msra.mxu0 %v582
    %1200 = vmatpush.msra.mxu0 %v577
    %1201 = vmatpush.msra.mxu0 %v572
    %1202 = vmatpush.msra.mxu0 %v567
    %1203 = vmatpush.msra.mxu0 %v562
    %1204 = vmatpush.msra.mxu0 %v557
    %1205 = vmatpush.msra.mxu0 %v552
    %1206 = vmatpush.msra.mxu0 %v547
    %1207 = vmatpush.msra.mxu0 %v542
    %1208 = vmatpush.msra.mxu0 %v537
    %1209 = vmatpush.msra.mxu0 %v532
    %1210 = vmatmul.f32.gmra.mxu0 %v1013
    %v1211 = vpop.f32.mrf.mxu0
    %v1212 = vadd.f32 %v1192, %v1211
    %1213 = vdwg.mxu0
    %v1214 = vadd.f32 %v850, %v1052
    %v1215 = vadd.f32 %v890, %v1092
    %v1216 = vadd.f32 %v930, %v1132
    %v1217 = vadd.f32 %v970, %v1172
    %v1218 = vadd.f32 %v1010, %v1212
    %v1219 = vld [vmem:[%s6] sm:$0xff]
    %1221 = vset.pattern.permute.xlu0 0
    %1222 = vperm.xlu0 %1221, %v1219
    %v1223 = vpop.permute.xlu0 %1222
    %v1225 = vmul.f32 %v1223, %v1214
    %v1226 = vmul.f32 %v1223, %v1215
    %v1227 = vmul.f32 %v1223, %v1216
    %v1228 = vmul.f32 %v1223, %v1217
    %v1229 = vmul.f32 %v1223, %v1218
    %v1230 = vand.u32 2147483647, %v1225
    %vm1231 = vcmp.le.f32.partialorder %v1230, 0.7853982
    %vm1232 = vcmp.lt.s32.totalorder %v1225, 0
    %v1233 = vand.u32 %v1225, 2139095040
    %v1234 = vshrl.u32 %v1233, 23
    %v1235 = vsub.s32 %v1234, 127
    %v1236 = vand.u32 2147483647, %v1225
    %v1237 = vand.u32 %v1236, 8388607
    %v1238 = vor.u32 %v1237, 8388608
    %v1239 = vsub.s32 0, %v1238
    %v1240 = vadd.s32 %v1235, 1
    %vm1241 = vcmp.gt.s32.totalorder %v1240, 0
    %v1242 = vsel %vm1241, %v1240, 0
    %v1243 = vshrl.u32 %v1242, 5
    %v1244 = vand.u32 %v1242, 31
    %v1245 = vsub.s32 32, %v1244
    %v1246 = vshrl.u32 683565275, %v1245
    %v1247 = vshll.u32 683565275, %v1244
    %v1248 = vshrl.u32 2475754826, %v1245
    %v1249 = vor.u32 %v1247, %v1248
    %v1250 = vshll.u32 2475754826, %v1244
    %v1251 = vshrl.u32 2131351028, %v1245
    %v1252 = vor.u32 %v1250, %v1251
    %v1253 = vshll.u32 2131351028, %v1244
    %v1254 = vshrl.u32 2102212464, %v1245
    %v1255 = vor.u32 %v1253, %v1254
    %v1256 = vshll.u32 2102212464, %v1244
    %v1257 = vshrl.u32 920167782, %v1245
    %v1258 = vor.u32 %v1256, %v1257
    %v1259 = vshll.u32 920167782, %v1244
    %v1260 = vshrl.u32 1326507024, %v1245
    %v1261 = vor.u32 %v1259, %v1260
    %vm1262 = vcmp.lt.s32.totalorder %v1243, 1
    %vm1263 = vcmp.lt.s32.totalorder %v1243, 2
    %vm1264 = vcmp.lt.s32.totalorder %v1243, 3
    %vm1265 = vcmp.lt.s32.totalorder %v1243, 4
    %v1266 = vsel %vm1262, %v1246, %v1249
    %v1267 = vsel %vm1265, %v1255, 2102212464
    %v1268 = vsel %vm1264, %v1252, %v1267
    %v1269 = vsel %vm1263, %v1266, %v1268
    %v1270 = vsel %vm1262, %v1249, %v1252
    %v1271 = vsel %vm1265, %v1258, 920167782
    %v1272 = vsel %vm1264, %v1255, %v1271
    %v1273 = vsel %vm1263, %v1270, %v1272
    %v1274 = vsel %vm1262, %v1252, %v1255
    %v1275 = vsel %vm1265, %v1261, 1326507024
    %v1276 = vsel %vm1264, %v1258, %v1275
    %v1277 = vsel %vm1263, %v1274, %v1276
    %v1278 = vshll.u32 %v1238, 8
    %v1279 = vand.u32 %v1278, 65535
    %v1280 = vshrl.u32 %v1278, 16
    %v1281 = vand.u32 %v1277, 65535
    %v1282 = vshrl.u32 %v1277, 16
    %v1283 = vmul.u32 %v1279, %v1281
    %v1284 = vmul.u32 %v1279, %v1282
    %v1285 = vmul.u32 %v1280, %v1281
    %v1286 = vmul.u32 %v1280, %v1282
    %v1287 = vshll.u32 %v1284, 16
    %v1288 = vshrl.u32 %v1284, 16
    %v1289 = vshll.u32 %v1285, 16
    %v1290 = vshrl.u32 %v1285, 16
    %vm1291 = vc.u32 %v1283, %v1287
    %v1292 = vsel %vm1291, 1, 0
    %v1293 = vadd.s32 %v1283, %v1287
    %v1294 = vadd.s32 %v1286, %v1292
    %vm1295 = vc.u32 %v1293, %v1289
    %v1296 = vsel %vm1295, 1, 0
    %v1297 = vadd.s32 %v1293, %v1289
    %v1298 = vadd.s32 %v1294, %v1296
    %v1299 = vadd.s32 %v1298, %v1288
    %v1300 = vadd.s32 %v1299, %v1290
    %v1301 = vand.u32 %v1278, 65535
    %v1302 = vshrl.u32 %v1278, 16
    %v1303 = vand.u32 %v1273, 65535
    %v1304 = vshrl.u32 %v1273, 16
    %v1305 = vmul.u32 %v1301, %v1303
    %v1306 = vmul.u32 %v1301, %v1304
    %v1307 = vmul.u32 %v1302, %v1303
    %v1308 = vmul.u32 %v1302, %v1304
    %v1309 = vshll.u32 %v1306, 16
    %v1310 = vshrl.u32 %v1306, 16
    %v1311 = vshll.u32 %v1307, 16
    %v1312 = vshrl.u32 %v1307, 16
    %vm1313 = vc.u32 %v1305, %v1309
    %v1314 = vsel %vm1313, 1, 0
    %v1315 = vadd.s32 %v1305, %v1309
    %v1316 = vadd.s32 %v1308, %v1314
    %vm1317 = vc.u32 %v1315, %v1311
    %v1318 = vsel %vm1317, 1, 0
    %v1319 = vadd.s32 %v1315, %v1311
    %v1320 = vadd.s32 %v1316, %v1318
    %v1321 = vadd.s32 %v1320, %v1310
    %v1322 = vadd.s32 %v1321, %v1312
    %v1323 = vmul.u32 %v1278, %v1269
    %v1324 = vadd.s32 %v1300, %v1319
    %vm1325 = vc.u32 %v1300, %v1319
    %v1326 = vadd.s32 %v1322, 1
    %v1327 = vsel %vm1325, %v1326, %v1322
    %v1328 = vadd.s32 %v1323, %v1327
    %v1329 = vadd.s32 %v1328, 536870912
    %v1330 = vshrl.u32 %v1329, 30
    %v1331 = vshll.u32 %v1330, 30
    %v1332 = vsub.s32 %v1328, %v1331
    %vm1333 = vcmp.lt.s32.totalorder %v1332, 0
    %v1334 = vsub.s32 0, %v1332
    %v1335 = vsel %vm1333, %v1334, %v1332
    %v1336 = vclz %v1335
    %v1337 = vsub.s32 %v1336, 2
    %vm1338 = vcmp.gt.s32.totalorder 0, %v1337
    %v1339 = vsel %vm1338, 0, %v1337
    %v1340 = vsub.s32 32, %v1339
    %v1341 = vshll.u32 %v1332, %v1339
    %v1342 = vshrl.u32 %v1324, %v1340
    %v1343 = vor.u32 %v1341, %v1342
    %v1344 = vsub.s32 4294967266, %v1339
    %v1345 = vadd.s32 %v1344, 127
    %v1346 = vshll.u32 %v1345, 23
    %v1347 = vor.u32 4788187, %v1346
    %v1348 = vand.u32 2147483647, %v1347
    %v1350 = vcvt.s32.f32 %v1343
    %v1351 = vmul.f32 %v1350, %v1348
    %v1352 = vxor.u32 %v1351, 2147483648
    %v1353 = vsel %vm1232, %v1352, %v1351
    %v1354 = vsub.s32 4, %v1330
    %v1355 = vsel %vm1232, %v1354, %v1330
    %v1356 = vsel %vm1231, %v1225, %v1353
    %v1357 = vsel %vm1231, 0, %v1355
    %v1358 = vmul.f32 %v1356, %v1356
    %v1359 = vmul.f32 %v1358, -0.001358992
    %v1360 = vadd.f32 %v1359, 0.041655596
    %v1361 = vmul.f32 %v1358, %v1360
    %v1362 = vadd.f32 %v1361, -0.4999988
    %v1363 = vmul.f32 %v1358, %v1362
    %v1364 = vadd.f32 1.0, %v1363
    %v1365 = vmul.f32 %v1356, %v1356
    %v1366 = vmul.f32 %v1365, -0.00019511016
    %v1367 = vadd.f32 %v1366, 0.008332121
    %v1368 = vmul.f32 %v1365, %v1367
    %v1369 = vadd.f32 %v1368, -0.16666654
    %v1370 = vmul.f32 %v1365, %v1369
    %v1371 = vadd.f32 %v1370, 1.0
    %v1372 = vmul.f32 %v1371, %v1356
    %vm1373 = vweird.f32 %v1225
    %v1374 = vadd.s32 %v1357, 3
    %v1375 = vand.u32 %v1374, 3
    %vm1376 = vcmp.lt.s32.totalorder %v1375, 2
    %vm1377 = vcmp.eq.s32.totalorder %v1375, 0
    %v1378 = vxor.u32 %v1372, 2147483648
    %v1379 = vsel %vm1377, %v1364, %v1378
    %vm1380 = vcmp.eq.s32.totalorder %v1375, 2
    %v1381 = vxor.u32 %v1364, 2147483648
    %v1382 = vsel %vm1380, %v1381, %v1372
    %v1383 = vsel %vm1376, %v1379, %v1382
    %v1384 = vsel %vm1373, nan, %v1383
    %v1385 = vand.u32 2147483647, %v1226
    %vm1386 = vcmp.le.f32.partialorder %v1385, 0.7853982
    %vm1387 = vcmp.lt.s32.totalorder %v1226, 0
    %v1388 = vand.u32 %v1226, 2139095040
    %v1389 = vshrl.u32 %v1388, 23
    %v1390 = vsub.s32 %v1389, 127
    %v1391 = vand.u32 2147483647, %v1226
    %v1392 = vand.u32 %v1391, 8388607
    %v1393 = vor.u32 %v1392, 8388608
    %v1394 = vsub.s32 0, %v1393
    %v1395 = vadd.s32 %v1390, 1
    %vm1396 = vcmp.gt.s32.totalorder %v1395, 0
    %v1397 = vsel %vm1396, %v1395, 0
    %v1398 = vshrl.u32 %v1397, 5
    %v1399 = vand.u32 %v1397, 31
    %v1400 = vsub.s32 32, %v1399
    %v1401 = vshrl.u32 683565275, %v1400
    %v1402 = vshll.u32 683565275, %v1399
    %v1403 = vshrl.u32 2475754826, %v1400
    %v1404 = vor.u32 %v1402, %v1403
    %v1405 = vshll.u32 2475754826, %v1399
    %v1406 = vshrl.u32 2131351028, %v1400
    %v1407 = vor.u32 %v1405, %v1406
    %v1408 = vshll.u32 2131351028, %v1399
    %v1409 = vshrl.u32 2102212464, %v1400
    %v1410 = vor.u32 %v1408, %v1409
    %v1411 = vshll.u32 2102212464, %v1399
    %v1412 = vshrl.u32 920167782, %v1400
    %v1413 = vor.u32 %v1411, %v1412
    %v1414 = vshll.u32 920167782, %v1399
    %v1415 = vshrl.u32 1326507024, %v1400
    %v1416 = vor.u32 %v1414, %v1415
    %vm1417 = vcmp.lt.s32.totalorder %v1398, 1
    %vm1418 = vcmp.lt.s32.totalorder %v1398, 2
    %vm1419 = vcmp.lt.s32.totalorder %v1398, 3
    %vm1420 = vcmp.lt.s32.totalorder %v1398, 4
    %v1421 = vsel %vm1417, %v1401, %v1404
    %v1422 = vsel %vm1420, %v1410, 2102212464
    %v1423 = vsel %vm1419, %v1407, %v1422
    %v1424 = vsel %vm1418, %v1421, %v1423
    %v1425 = vsel %vm1417, %v1404, %v1407
    %v1426 = vsel %vm1420, %v1413, 920167782
    %v1427 = vsel %vm1419, %v1410, %v1426
    %v1428 = vsel %vm1418, %v1425, %v1427
    %v1429 = vsel %vm1417, %v1407, %v1410
    %v1430 = vsel %vm1420, %v1416, 1326507024
    %v1431 = vsel %vm1419, %v1413, %v1430
    %v1432 = vsel %vm1418, %v1429, %v1431
    %v1433 = vshll.u32 %v1393, 8
    %v1434 = vand.u32 %v1433, 65535
    %v1435 = vshrl.u32 %v1433, 16
    %v1436 = vand.u32 %v1432, 65535
    %v1437 = vshrl.u32 %v1432, 16
    %v1438 = vmul.u32 %v1434, %v1436
    %v1439 = vmul.u32 %v1434, %v1437
    %v1440 = vmul.u32 %v1435, %v1436
    %v1441 = vmul.u32 %v1435, %v1437
    %v1442 = vshll.u32 %v1439, 16
    %v1443 = vshrl.u32 %v1439, 16
    %v1444 = vshll.u32 %v1440, 16
    %v1445 = vshrl.u32 %v1440, 16
    %vm1446 = vc.u32 %v1438, %v1442
    %v1447 = vsel %vm1446, 1, 0
    %v1448 = vadd.s32 %v1438, %v1442
    %v1449 = vadd.s32 %v1441, %v1447
    %vm1450 = vc.u32 %v1448, %v1444
    %v1451 = vsel %vm1450, 1, 0
    %v1452 = vadd.s32 %v1448, %v1444
    %v1453 = vadd.s32 %v1449, %v1451
    %v1454 = vadd.s32 %v1453, %v1443
    %v1455 = vadd.s32 %v1454, %v1445
    %v1456 = vand.u32 %v1433, 65535
    %v1457 = vshrl.u32 %v1433, 16
    %v1458 = vand.u32 %v1428, 65535
    %v1459 = vshrl.u32 %v1428, 16
    %v1460 = vmul.u32 %v1456, %v1458
    %v1461 = vmul.u32 %v1456, %v1459
    %v1462 = vmul.u32 %v1457, %v1458
    %v1463 = vmul.u32 %v1457, %v1459
    %v1464 = vshll.u32 %v1461, 16
    %v1465 = vshrl.u32 %v1461, 16
    %v1466 = vshll.u32 %v1462, 16
    %v1467 = vshrl.u32 %v1462, 16
    %vm1468 = vc.u32 %v1460, %v1464
    %v1469 = vsel %vm1468, 1, 0
    %v1470 = vadd.s32 %v1460, %v1464
    %v1471 = vadd.s32 %v1463, %v1469
    %vm1472 = vc.u32 %v1470, %v1466
    %v1473 = vsel %vm1472, 1, 0
    %v1474 = vadd.s32 %v1470, %v1466
    %v1475 = vadd.s32 %v1471, %v1473
    %v1476 = vadd.s32 %v1475, %v1465
    %v1477 = vadd.s32 %v1476, %v1467
    %v1478 = vmul.u32 %v1433, %v1424
    %v1479 = vadd.s32 %v1455, %v1474
    %vm1480 = vc.u32 %v1455, %v1474
    %v1481 = vadd.s32 %v1477, 1
    %v1482 = vsel %vm1480, %v1481, %v1477
    %v1483 = vadd.s32 %v1478, %v1482
    %v1484 = vadd.s32 %v1483, 536870912
    %v1485 = vshrl.u32 %v1484, 30
    %v1486 = vshll.u32 %v1485, 30
    %v1487 = vsub.s32 %v1483, %v1486
    %vm1488 = vcmp.lt.s32.totalorder %v1487, 0
    %v1489 = vsub.s32 0, %v1487
    %v1490 = vsel %vm1488, %v1489, %v1487
    %v1491 = vclz %v1490
    %v1492 = vsub.s32 %v1491, 2
    %vm1493 = vcmp.gt.s32.totalorder 0, %v1492
    %v1494 = vsel %vm1493, 0, %v1492
    %v1495 = vsub.s32 32, %v1494
    %v1496 = vshll.u32 %v1487, %v1494
    %v1497 = vshrl.u32 %v1479, %v1495
    %v1498 = vor.u32 %v1496, %v1497
    %v1499 = vsub.s32 4294967266, %v1494
    %v1500 = vadd.s32 %v1499, 127
    %v1501 = vshll.u32 %v1500, 23
    %v1502 = vor.u32 4788187, %v1501
    %v1503 = vand.u32 2147483647, %v1502
    %v1505 = vcvt.s32.f32 %v1498
    %v1506 = vmul.f32 %v1505, %v1503
    %v1507 = vxor.u32 %v1506, 2147483648
    %v1508 = vsel %vm1387, %v1507, %v1506
    %v1509 = vsub.s32 4, %v1485
    %v1510 = vsel %vm1387, %v1509, %v1485
    %v1511 = vsel %vm1386, %v1226, %v1508
    %v1512 = vsel %vm1386, 0, %v1510
    %v1513 = vmul.f32 %v1511, %v1511
    %v1514 = vmul.f32 %v1513, -0.001358992
    %v1515 = vadd.f32 %v1514, 0.041655596
    %v1516 = vmul.f32 %v1513, %v1515
    %v1517 = vadd.f32 %v1516, -0.4999988
    %v1518 = vmul.f32 %v1513, %v1517
    %v1519 = vadd.f32 1.0, %v1518
    %v1520 = vmul.f32 %v1511, %v1511
    %v1521 = vmul.f32 %v1520, -0.00019511016
    %v1522 = vadd.f32 %v1521, 0.008332121
    %v1523 = vmul.f32 %v1520, %v1522
    %v1524 = vadd.f32 %v1523, -0.16666654
    %v1525 = vmul.f32 %v1520, %v1524
    %v1526 = vadd.f32 %v1525, 1.0
    %v1527 = vmul.f32 %v1526, %v1511
    %vm1528 = vweird.f32 %v1226
    %v1529 = vadd.s32 %v1512, 3
    %v1530 = vand.u32 %v1529, 3
    %vm1531 = vcmp.lt.s32.totalorder %v1530, 2
    %vm1532 = vcmp.eq.s32.totalorder %v1530, 0
    %v1533 = vxor.u32 %v1527, 2147483648
    %v1534 = vsel %vm1532, %v1519, %v1533
    %vm1535 = vcmp.eq.s32.totalorder %v1530, 2
    %v1536 = vxor.u32 %v1519, 2147483648
    %v1537 = vsel %vm1535, %v1536, %v1527
    %v1538 = vsel %vm1531, %v1534, %v1537
    %v1539 = vsel %vm1528, nan, %v1538
    %v1540 = vand.u32 2147483647, %v1227
    %vm1541 = vcmp.le.f32.partialorder %v1540, 0.7853982
    %vm1542 = vcmp.lt.s32.totalorder %v1227, 0
    %v1543 = vand.u32 %v1227, 2139095040
    %v1544 = vshrl.u32 %v1543, 23
    %v1545 = vsub.s32 %v1544, 127
    %v1546 = vand.u32 2147483647, %v1227
    %v1547 = vand.u32 %v1546, 8388607
    %v1548 = vor.u32 %v1547, 8388608
    %v1549 = vsub.s32 0, %v1548
    %v1550 = vadd.s32 %v1545, 1
    %vm1551 = vcmp.gt.s32.totalorder %v1550, 0
    %v1552 = vsel %vm1551, %v1550, 0
    %v1553 = vshrl.u32 %v1552, 5
    %v1554 = vand.u32 %v1552, 31
    %v1555 = vsub.s32 32, %v1554
    %v1556 = vshrl.u32 683565275, %v1555
    %v1557 = vshll.u32 683565275, %v1554
    %v1558 = vshrl.u32 2475754826, %v1555
    %v1559 = vor.u32 %v1557, %v1558
    %v1560 = vshll.u32 2475754826, %v1554
    %v1561 = vshrl.u32 2131351028, %v1555
    %v1562 = vor.u32 %v1560, %v1561
    %v1563 = vshll.u32 2131351028, %v1554
    %v1564 = vshrl.u32 2102212464, %v1555
    %v1565 = vor.u32 %v1563, %v1564
    %v1566 = vshll.u32 2102212464, %v1554
    %v1567 = vshrl.u32 920167782, %v1555
    %v1568 = vor.u32 %v1566, %v1567
    %v1569 = vshll.u32 920167782, %v1554
    %v1570 = vshrl.u32 1326507024, %v1555
    %v1571 = vor.u32 %v1569, %v1570
    %vm1572 = vcmp.lt.s32.totalorder %v1553, 1
    %vm1573 = vcmp.lt.s32.totalorder %v1553, 2
    %vm1574 = vcmp.lt.s32.totalorder %v1553, 3
    %vm1575 = vcmp.lt.s32.totalorder %v1553, 4
    %v1576 = vsel %vm1572, %v1556, %v1559
    %v1577 = vsel %vm1575, %v1565, 2102212464
    %v1578 = vsel %vm1574, %v1562, %v1577
    %v1579 = vsel %vm1573, %v1576, %v1578
    %v1580 = vsel %vm1572, %v1559, %v1562
    %v1581 = vsel %vm1575, %v1568, 920167782
    %v1582 = vsel %vm1574, %v1565, %v1581
    %v1583 = vsel %vm1573, %v1580, %v1582
    %v1584 = vsel %vm1572, %v1562, %v1565
    %v1585 = vsel %vm1575, %v1571, 1326507024
    %v1586 = vsel %vm1574, %v1568, %v1585
    %v1587 = vsel %vm1573, %v1584, %v1586
    %v1588 = vshll.u32 %v1548, 8
    %v1589 = vand.u32 %v1588, 65535
    %v1590 = vshrl.u32 %v1588, 16
    %v1591 = vand.u32 %v1587, 65535
    %v1592 = vshrl.u32 %v1587, 16
    %v1593 = vmul.u32 %v1589, %v1591
    %v1594 = vmul.u32 %v1589, %v1592
    %v1595 = vmul.u32 %v1590, %v1591
    %v1596 = vmul.u32 %v1590, %v1592
    %v1597 = vshll.u32 %v1594, 16
    %v1598 = vshrl.u32 %v1594, 16
    %v1599 = vshll.u32 %v1595, 16
    %v1600 = vshrl.u32 %v1595, 16
    %vm1601 = vc.u32 %v1593, %v1597
    %v1602 = vsel %vm1601, 1, 0
    %v1603 = vadd.s32 %v1593, %v1597
    %v1604 = vadd.s32 %v1596, %v1602
    %vm1605 = vc.u32 %v1603, %v1599
    %v1606 = vsel %vm1605, 1, 0
    %v1607 = vadd.s32 %v1603, %v1599
    %v1608 = vadd.s32 %v1604, %v1606
    %v1609 = vadd.s32 %v1608, %v1598
    %v1610 = vadd.s32 %v1609, %v1600
    %v1611 = vand.u32 %v1588, 65535
    %v1612 = vshrl.u32 %v1588, 16
    %v1613 = vand.u32 %v1583, 65535
    %v1614 = vshrl.u32 %v1583, 16
    %v1615 = vmul.u32 %v1611, %v1613
    %v1616 = vmul.u32 %v1611, %v1614
    %v1617 = vmul.u32 %v1612, %v1613
    %v1618 = vmul.u32 %v1612, %v1614
    %v1619 = vshll.u32 %v1616, 16
    %v1620 = vshrl.u32 %v1616, 16
    %v1621 = vshll.u32 %v1617, 16
    %v1622 = vshrl.u32 %v1617, 16
    %vm1623 = vc.u32 %v1615, %v1619
    %v1624 = vsel %vm1623, 1, 0
    %v1625 = vadd.s32 %v1615, %v1619
    %v1626 = vadd.s32 %v1618, %v1624
    %vm1627 = vc.u32 %v1625, %v1621
    %v1628 = vsel %vm1627, 1, 0
    %v1629 = vadd.s32 %v1625, %v1621
    %v1630 = vadd.s32 %v1626, %v1628
    %v1631 = vadd.s32 %v1630, %v1620
    %v1632 = vadd.s32 %v1631, %v1622
    %v1633 = vmul.u32 %v1588, %v1579
    %v1634 = vadd.s32 %v1610, %v1629
    %vm1635 = vc.u32 %v1610, %v1629
    %v1636 = vadd.s32 %v1632, 1
    %v1637 = vsel %vm1635, %v1636, %v1632
    %v1638 = vadd.s32 %v1633, %v1637
    %v1639 = vadd.s32 %v1638, 536870912
    %v1640 = vshrl.u32 %v1639, 30
    %v1641 = vshll.u32 %v1640, 30
    %v1642 = vsub.s32 %v1638, %v1641
    %vm1643 = vcmp.lt.s32.totalorder %v1642, 0
    %v1644 = vsub.s32 0, %v1642
    %v1645 = vsel %vm1643, %v1644, %v1642
    %v1646 = vclz %v1645
    %v1647 = vsub.s32 %v1646, 2
    %vm1648 = vcmp.gt.s32.totalorder 0, %v1647
    %v1649 = vsel %vm1648, 0, %v1647
    %v1650 = vsub.s32 32, %v1649
    %v1651 = vshll.u32 %v1642, %v1649
    %v1652 = vshrl.u32 %v1634, %v1650
    %v1653 = vor.u32 %v1651, %v1652
    %v1654 = vsub.s32 4294967266, %v1649
    %v1655 = vadd.s32 %v1654, 127
    %v1656 = vshll.u32 %v1655, 23
    %v1657 = vor.u32 4788187, %v1656
    %v1658 = vand.u32 2147483647, %v1657
    %v1660 = vcvt.s32.f32 %v1653
    %v1661 = vmul.f32 %v1660, %v1658
    %v1662 = vxor.u32 %v1661, 2147483648
    %v1663 = vsel %vm1542, %v1662, %v1661
    %v1664 = vsub.s32 4, %v1640
    %v1665 = vsel %vm1542, %v1664, %v1640
    %v1666 = vsel %vm1541, %v1227, %v1663
    %v1667 = vsel %vm1541, 0, %v1665
    %v1668 = vmul.f32 %v1666, %v1666
    %v1669 = vmul.f32 %v1668, -0.001358992
    %v1670 = vadd.f32 %v1669, 0.041655596
    %v1671 = vmul.f32 %v1668, %v1670
    %v1672 = vadd.f32 %v1671, -0.4999988
    %v1673 = vmul.f32 %v1668, %v1672
    %v1674 = vadd.f32 1.0, %v1673
    %v1675 = vmul.f32 %v1666, %v1666
    %v1676 = vmul.f32 %v1675, -0.00019511016
    %v1677 = vadd.f32 %v1676, 0.008332121
    %v1678 = vmul.f32 %v1675, %v1677
    %v1679 = vadd.f32 %v1678, -0.16666654
    %v1680 = vmul.f32 %v1675, %v1679
    %v1681 = vadd.f32 %v1680, 1.0
    %v1682 = vmul.f32 %v1681, %v1666
    %vm1683 = vweird.f32 %v1227
    %v1684 = vadd.s32 %v1667, 3
    %v1685 = vand.u32 %v1684, 3
    %vm1686 = vcmp.lt.s32.totalorder %v1685, 2
    %vm1687 = vcmp.eq.s32.totalorder %v1685, 0
    %v1688 = vxor.u32 %v1682, 2147483648
    %v1689 = vsel %vm1687, %v1674, %v1688
    %vm1690 = vcmp.eq.s32.totalorder %v1685, 2
    %v1691 = vxor.u32 %v1674, 2147483648
    %v1692 = vsel %vm1690, %v1691, %v1682
    %v1693 = vsel %vm1686, %v1689, %v1692
    %v1694 = vsel %vm1683, nan, %v1693
    %v1695 = vand.u32 2147483647, %v1228
    %vm1696 = vcmp.le.f32.partialorder %v1695, 0.7853982
    %vm1697 = vcmp.lt.s32.totalorder %v1228, 0
    %v1698 = vand.u32 %v1228, 2139095040
    %v1699 = vshrl.u32 %v1698, 23
    %v1700 = vsub.s32 %v1699, 127
    %v1701 = vand.u32 2147483647, %v1228
    %v1702 = vand.u32 %v1701, 8388607
    %v1703 = vor.u32 %v1702, 8388608
    %v1704 = vsub.s32 0, %v1703
    %v1705 = vadd.s32 %v1700, 1
    %vm1706 = vcmp.gt.s32.totalorder %v1705, 0
    %v1707 = vsel %vm1706, %v1705, 0
    %v1708 = vshrl.u32 %v1707, 5
    %v1709 = vand.u32 %v1707, 31
    %v1710 = vsub.s32 32, %v1709
    %v1711 = vshrl.u32 683565275, %v1710
    %v1712 = vshll.u32 683565275, %v1709
    %v1713 = vshrl.u32 2475754826, %v1710
    %v1714 = vor.u32 %v1712, %v1713
    %v1715 = vshll.u32 2475754826, %v1709
    %v1716 = vshrl.u32 2131351028, %v1710
    %v1717 = vor.u32 %v1715, %v1716
    %v1718 = vshll.u32 2131351028, %v1709
    %v1719 = vshrl.u32 2102212464, %v1710
    %v1720 = vor.u32 %v1718, %v1719
    %v1721 = vshll.u32 2102212464, %v1709
    %v1722 = vshrl.u32 920167782, %v1710
    %v1723 = vor.u32 %v1721, %v1722
    %v1724 = vshll.u32 920167782, %v1709
    %v1725 = vshrl.u32 1326507024, %v1710
    %v1726 = vor.u32 %v1724, %v1725
    %vm1727 = vcmp.lt.s32.totalorder %v1708, 1
    %vm1728 = vcmp.lt.s32.totalorder %v1708, 2
    %vm1729 = vcmp.lt.s32.totalorder %v1708, 3
    %vm1730 = vcmp.lt.s32.totalorder %v1708, 4
    %v1731 = vsel %vm1727, %v1711, %v1714
    %v1732 = vsel %vm1730, %v1720, 2102212464
    %v1733 = vsel %vm1729, %v1717, %v1732
    %v1734 = vsel %vm1728, %v1731, %v1733
    %v1735 = vsel %vm1727, %v1714, %v1717
    %v1736 = vsel %vm1730, %v1723, 920167782
    %v1737 = vsel %vm1729, %v1720, %v1736
    %v1738 = vsel %vm1728, %v1735, %v1737
    %v1739 = vsel %vm1727, %v1717, %v1720
    %v1740 = vsel %vm1730, %v1726, 1326507024
    %v1741 = vsel %vm1729, %v1723, %v1740
    %v1742 = vsel %vm1728, %v1739, %v1741
    %v1743 = vshll.u32 %v1703, 8
    %v1744 = vand.u32 %v1743, 65535
    %v1745 = vshrl.u32 %v1743, 16
    %v1746 = vand.u32 %v1742, 65535
    %v1747 = vshrl.u32 %v1742, 16
    %v1748 = vmul.u32 %v1744, %v1746
    %v1749 = vmul.u32 %v1744, %v1747
    %v1750 = vmul.u32 %v1745, %v1746
    %v1751 = vmul.u32 %v1745, %v1747
    %v1752 = vshll.u32 %v1749, 16
    %v1753 = vshrl.u32 %v1749, 16
    %v1754 = vshll.u32 %v1750, 16
    %v1755 = vshrl.u32 %v1750, 16
    %vm1756 = vc.u32 %v1748, %v1752
    %v1757 = vsel %vm1756, 1, 0
    %v1758 = vadd.s32 %v1748, %v1752
    %v1759 = vadd.s32 %v1751, %v1757
    %vm1760 = vc.u32 %v1758, %v1754
    %v1761 = vsel %vm1760, 1, 0
    %v1762 = vadd.s32 %v1758, %v1754
    %v1763 = vadd.s32 %v1759, %v1761
    %v1764 = vadd.s32 %v1763, %v1753
    %v1765 = vadd.s32 %v1764, %v1755
    %v1766 = vand.u32 %v1743, 65535
    %v1767 = vshrl.u32 %v1743, 16
    %v1768 = vand.u32 %v1738, 65535
    %v1769 = vshrl.u32 %v1738, 16
    %v1770 = vmul.u32 %v1766, %v1768
    %v1771 = vmul.u32 %v1766, %v1769
    %v1772 = vmul.u32 %v1767, %v1768
    %v1773 = vmul.u32 %v1767, %v1769
    %v1774 = vshll.u32 %v1771, 16
    %v1775 = vshrl.u32 %v1771, 16
    %v1776 = vshll.u32 %v1772, 16
    %v1777 = vshrl.u32 %v1772, 16
    %vm1778 = vc.u32 %v1770, %v1774
    %v1779 = vsel %vm1778, 1, 0
    %v1780 = vadd.s32 %v1770, %v1774
    %v1781 = vadd.s32 %v1773, %v1779
    %vm1782 = vc.u32 %v1780, %v1776
    %v1783 = vsel %vm1782, 1, 0
    %v1784 = vadd.s32 %v1780, %v1776
    %v1785 = vadd.s32 %v1781, %v1783
    %v1786 = vadd.s32 %v1785, %v1775
    %v1787 = vadd.s32 %v1786, %v1777
    %v1788 = vmul.u32 %v1743, %v1734
    %v1789 = vadd.s32 %v1765, %v1784
    %vm1790 = vc.u32 %v1765, %v1784
    %v1791 = vadd.s32 %v1787, 1
    %v1792 = vsel %vm1790, %v1791, %v1787
    %v1793 = vadd.s32 %v1788, %v1792
    %v1794 = vadd.s32 %v1793, 536870912
    %v1795 = vshrl.u32 %v1794, 30
    %v1796 = vshll.u32 %v1795, 30
    %v1797 = vsub.s32 %v1793, %v1796
    %vm1798 = vcmp.lt.s32.totalorder %v1797, 0
    %v1799 = vsub.s32 0, %v1797
    %v1800 = vsel %vm1798, %v1799, %v1797
    %v1801 = vclz %v1800
    %v1802 = vsub.s32 %v1801, 2
    %vm1803 = vcmp.gt.s32.totalorder 0, %v1802
    %v1804 = vsel %vm1803, 0, %v1802
    %v1805 = vsub.s32 32, %v1804
    %v1806 = vshll.u32 %v1797, %v1804
    %v1807 = vshrl.u32 %v1789, %v1805
    %v1808 = vor.u32 %v1806, %v1807
    %v1809 = vsub.s32 4294967266, %v1804
    %v1810 = vadd.s32 %v1809, 127
    %v1811 = vshll.u32 %v1810, 23
    %v1812 = vor.u32 4788187, %v1811
    %v1813 = vand.u32 2147483647, %v1812
    %v1815 = vcvt.s32.f32 %v1808
    %v1816 = vmul.f32 %v1815, %v1813
    %v1817 = vxor.u32 %v1816, 2147483648
    %v1818 = vsel %vm1697, %v1817, %v1816
    %v1819 = vsub.s32 4, %v1795
    %v1820 = vsel %vm1697, %v1819, %v1795
    %v1821 = vsel %vm1696, %v1228, %v1818
    %v1822 = vsel %vm1696, 0, %v1820
    %v1823 = vmul.f32 %v1821, %v1821
    %v1824 = vmul.f32 %v1823, -0.001358992
    %v1825 = vadd.f32 %v1824, 0.041655596
    %v1826 = vmul.f32 %v1823, %v1825
    %v1827 = vadd.f32 %v1826, -0.4999988
    %v1828 = vmul.f32 %v1823, %v1827
    %v1829 = vadd.f32 1.0, %v1828
    %v1830 = vmul.f32 %v1821, %v1821
    %v1831 = vmul.f32 %v1830, -0.00019511016
    %v1832 = vadd.f32 %v1831, 0.008332121
    %v1833 = vmul.f32 %v1830, %v1832
    %v1834 = vadd.f32 %v1833, -0.16666654
    %v1835 = vmul.f32 %v1830, %v1834
    %v1836 = vadd.f32 %v1835, 1.0
    %v1837 = vmul.f32 %v1836, %v1821
    %vm1838 = vweird.f32 %v1228
    %v1839 = vadd.s32 %v1822, 3
    %v1840 = vand.u32 %v1839, 3
    %vm1841 = vcmp.lt.s32.totalorder %v1840, 2
    %vm1842 = vcmp.eq.s32.totalorder %v1840, 0
    %v1843 = vxor.u32 %v1837, 2147483648
    %v1844 = vsel %vm1842, %v1829, %v1843
    %vm1845 = vcmp.eq.s32.totalorder %v1840, 2
    %v1846 = vxor.u32 %v1829, 2147483648
    %v1847 = vsel %vm1845, %v1846, %v1837
    %v1848 = vsel %vm1841, %v1844, %v1847
    %v1849 = vsel %vm1838, nan, %v1848
    %v1850 = vand.u32 2147483647, %v1229
    %vm1851 = vcmp.le.f32.partialorder %v1850, 0.7853982
    %vm1852 = vcmp.lt.s32.totalorder %v1229, 0
    %v1853 = vand.u32 %v1229, 2139095040
    %v1854 = vshrl.u32 %v1853, 23
    %v1855 = vsub.s32 %v1854, 127
    %v1856 = vand.u32 2147483647, %v1229
    %v1857 = vand.u32 %v1856, 8388607
    %v1858 = vor.u32 %v1857, 8388608
    %v1859 = vsub.s32 0, %v1858
    %v1860 = vadd.s32 %v1855, 1
    %vm1861 = vcmp.gt.s32.totalorder %v1860, 0
    %v1862 = vsel %vm1861, %v1860, 0
    %v1863 = vshrl.u32 %v1862, 5
    %v1864 = vand.u32 %v1862, 31
    %v1865 = vsub.s32 32, %v1864
    %v1866 = vshrl.u32 683565275, %v1865
    %v1867 = vshll.u32 683565275, %v1864
    %v1868 = vshrl.u32 2475754826, %v1865
    %v1869 = vor.u32 %v1867, %v1868
    %v1870 = vshll.u32 2475754826, %v1864
    %v1871 = vshrl.u32 2131351028, %v1865
    %v1872 = vor.u32 %v1870, %v1871
    %v1873 = vshll.u32 2131351028, %v1864
    %v1874 = vshrl.u32 2102212464, %v1865
    %v1875 = vor.u32 %v1873, %v1874
    %v1876 = vshll.u32 2102212464, %v1864
    %v1877 = vshrl.u32 920167782, %v1865
    %v1878 = vor.u32 %v1876, %v1877
    %v1879 = vshll.u32 920167782, %v1864
    %v1880 = vshrl.u32 1326507024, %v1865
    %v1881 = vor.u32 %v1879, %v1880
    %vm1882 = vcmp.lt.s32.totalorder %v1863, 1
    %vm1883 = vcmp.lt.s32.totalorder %v1863, 2
    %vm1884 = vcmp.lt.s32.totalorder %v1863, 3
    %vm1885 = vcmp.lt.s32.totalorder %v1863, 4
    %v1886 = vsel %vm1882, %v1866, %v1869
    %v1887 = vsel %vm1885, %v1875, 2102212464
    %v1888 = vsel %vm1884, %v1872, %v1887
    %v1889 = vsel %vm1883, %v1886, %v1888
    %v1890 = vsel %vm1882, %v1869, %v1872
    %v1891 = vsel %vm1885, %v1878, 920167782
    %v1892 = vsel %vm1884, %v1875, %v1891
    %v1893 = vsel %vm1883, %v1890, %v1892
    %v1894 = vsel %vm1882, %v1872, %v1875
    %v1895 = vsel %vm1885, %v1881, 1326507024
    %v1896 = vsel %vm1884, %v1878, %v1895
    %v1897 = vsel %vm1883, %v1894, %v1896
    %v1898 = vshll.u32 %v1858, 8
    %v1899 = vand.u32 %v1898, 65535
    %v1900 = vshrl.u32 %v1898, 16
    %v1901 = vand.u32 %v1897, 65535
    %v1902 = vshrl.u32 %v1897, 16
    %v1903 = vmul.u32 %v1899, %v1901
    %v1904 = vmul.u32 %v1899, %v1902
    %v1905 = vmul.u32 %v1900, %v1901
    %v1906 = vmul.u32 %v1900, %v1902
    %v1907 = vshll.u32 %v1904, 16
    %v1908 = vshrl.u32 %v1904, 16
    %v1909 = vshll.u32 %v1905, 16
    %v1910 = vshrl.u32 %v1905, 16
    %vm1911 = vc.u32 %v1903, %v1907
    %v1912 = vsel %vm1911, 1, 0
    %v1913 = vadd.s32 %v1903, %v1907
    %v1914 = vadd.s32 %v1906, %v1912
    %vm1915 = vc.u32 %v1913, %v1909
    %v1916 = vsel %vm1915, 1, 0
    %v1917 = vadd.s32 %v1913, %v1909
    %v1918 = vadd.s32 %v1914, %v1916
    %v1919 = vadd.s32 %v1918, %v1908
    %v1920 = vadd.s32 %v1919, %v1910
    %v1921 = vand.u32 %v1898, 65535
    %v1922 = vshrl.u32 %v1898, 16
    %v1923 = vand.u32 %v1893, 65535
    %v1924 = vshrl.u32 %v1893, 16
    %v1925 = vmul.u32 %v1921, %v1923
    %v1926 = vmul.u32 %v1921, %v1924
    %v1927 = vmul.u32 %v1922, %v1923
    %v1928 = vmul.u32 %v1922, %v1924
    %v1929 = vshll.u32 %v1926, 16
    %v1930 = vshrl.u32 %v1926, 16
    %v1931 = vshll.u32 %v1927, 16
    %v1932 = vshrl.u32 %v1927, 16
    %vm1933 = vc.u32 %v1925, %v1929
    %v1934 = vsel %vm1933, 1, 0
    %v1935 = vadd.s32 %v1925, %v1929
    %v1936 = vadd.s32 %v1928, %v1934
    %vm1937 = vc.u32 %v1935, %v1931
    %v1938 = vsel %vm1937, 1, 0
    %v1939 = vadd.s32 %v1935, %v1931
    %v1940 = vadd.s32 %v1936, %v1938
    %v1941 = vadd.s32 %v1940, %v1930
    %v1942 = vadd.s32 %v1941, %v1932
    %v1943 = vmul.u32 %v1898, %v1889
    %v1944 = vadd.s32 %v1920, %v1939
    %vm1945 = vc.u32 %v1920, %v1939
    %v1946 = vadd.s32 %v1942, 1
    %v1947 = vsel %vm1945, %v1946, %v1942
    %v1948 = vadd.s32 %v1943, %v1947
    %v1949 = vadd.s32 %v1948, 536870912
    %v1950 = vshrl.u32 %v1949, 30
    %v1951 = vshll.u32 %v1950, 30
    %v1952 = vsub.s32 %v1948, %v1951
    %vm1953 = vcmp.lt.s32.totalorder %v1952, 0
    %v1954 = vsub.s32 0, %v1952
    %v1955 = vsel %vm1953, %v1954, %v1952
    %v1956 = vclz %v1955
    %v1957 = vsub.s32 %v1956, 2
    %vm1958 = vcmp.gt.s32.totalorder 0, %v1957
    %v1959 = vsel %vm1958, 0, %v1957
    %v1960 = vsub.s32 32, %v1959
    %v1961 = vshll.u32 %v1952, %v1959
    %v1962 = vshrl.u32 %v1944, %v1960
    %v1963 = vor.u32 %v1961, %v1962
    %v1964 = vsub.s32 4294967266, %v1959
    %v1965 = vadd.s32 %v1964, 127
    %v1966 = vshll.u32 %v1965, 23
    %v1967 = vor.u32 4788187, %v1966
    %v1968 = vand.u32 2147483647, %v1967
    %v1970 = vcvt.s32.f32 %v1963
    %v1971 = vmul.f32 %v1970, %v1968
    %v1972 = vxor.u32 %v1971, 2147483648
    %v1973 = vsel %vm1852, %v1972, %v1971
    %v1974 = vsub.s32 4, %v1950
    %v1975 = vsel %vm1852, %v1974, %v1950
    %v1976 = vsel %vm1851, %v1229, %v1973
    %v1977 = vsel %vm1851, 0, %v1975
    %v1978 = vmul.f32 %v1976, %v1976
    %v1979 = vmul.f32 %v1978, -0.001358992
    %v1980 = vadd.f32 %v1979, 0.041655596
    %v1981 = vmul.f32 %v1978, %v1980
    %v1982 = vadd.f32 %v1981, -0.4999988
    %v1983 = vmul.f32 %v1978, %v1982
    %v1984 = vadd.f32 1.0, %v1983
    %v1985 = vmul.f32 %v1976, %v1976
    %v1986 = vmul.f32 %v1985, -0.00019511016
    %v1987 = vadd.f32 %v1986, 0.008332121
    %v1988 = vmul.f32 %v1985, %v1987
    %v1989 = vadd.f32 %v1988, -0.16666654
    %v1990 = vmul.f32 %v1985, %v1989
    %v1991 = vadd.f32 %v1990, 1.0
    %v1992 = vmul.f32 %v1991, %v1976
    %vm1993 = vweird.f32 %v1229
    %v1994 = vadd.s32 %v1977, 3
    %v1995 = vand.u32 %v1994, 3
    %vm1996 = vcmp.lt.s32.totalorder %v1995, 2
    %vm1997 = vcmp.eq.s32.totalorder %v1995, 0
    %v1998 = vxor.u32 %v1992, 2147483648
    %v1999 = vsel %vm1997, %v1984, %v1998
    %vm2000 = vcmp.eq.s32.totalorder %v1995, 2
    %v2001 = vxor.u32 %v1984, 2147483648
    %v2002 = vsel %vm2000, %v2001, %v1992
    %v2003 = vsel %vm1996, %v1999, %v2002
    %v2004 = vsel %vm1993, nan, %v2003
    %v2005 = vmul.f32 %v1384, %v1384
    %v2006 = vmul.f32 %v1539, %v1539
    %v2007 = vmul.f32 %v1694, %v1694
    %v2008 = vmul.f32 %v1849, %v1849
    %v2009 = vmul.f32 %v2004, %v2004
    %2010 = vset.pattern.permute.xlu0 1
    %2011 = vperm.xlu0 %2010, %v1219
    %v2012 = vpop.permute.xlu0 %2011
    %v2014 = vmul.f32 %v2005, %v2012
    %v2015 = vmul.f32 %v2006, %v2012
    %v2016 = vmul.f32 %v2007, %v2012
    %v2017 = vmul.f32 %v2008, %v2012
    %v2018 = vmul.f32 %v2009, %v2012
    %v2019 = vadd.f32 %v1214, %v2014
    %v2020 = vadd.f32 %v1215, %v2015
    %v2021 = vadd.f32 %v1216, %v2016
    %v2022 = vadd.f32 %v1217, %v2017
    %v2023 = vadd.f32 %v1218, %v2018
    %v2024 = vld [vmem:[#allocation12] sm:$0xff]
    %v2025 = vld [vmem:[#allocation12 + $0x8] sm:$0xff]
    %v2026 = vld [vmem:[#allocation12 + $0x10] sm:$0xff]
    %v2027 = vld [vmem:[#allocation12 + $0x18] sm:$0xff]
    %v2028 = vld [vmem:[#allocation12 + $0x20] sm:$0xff]
    %v2029 = vld [vmem:[#allocation12 + $0x28] sm:$0xff]
    %v2030 = vld [vmem:[#allocation12 + $0x30] sm:$0xff]
    %v2031 = vld [vmem:[#allocation12 + $0x38] sm:$0xff]
    %v2032 = vld [vmem:[#allocation12 + $0x40] sm:$0xff]
    %v2033 = vld [vmem:[#allocation12 + $0x48] sm:$0xff]
    %v2034 = vld [vmem:[#allocation12 + $0x50] sm:$0xff]
    %v2035 = vld [vmem:[#allocation12 + $0x58] sm:$0xff]
    %v2036 = vld [vmem:[#allocation12 + $0x60] sm:$0xff]
    %v2037 = vld [vmem:[#allocation12 + $0x68] sm:$0xff]
    %v2038 = vld [vmem:[#allocation12 + $0x70] sm:$0xff]
    %v2039 = vld [vmem:[#allocation12 + $0x78] sm:$0xff]
    %v2040 = vld [vmem:[#allocation12 + $0x80] sm:$0xff]
    %v2041 = vld [vmem:[#allocation12 + $0x88] sm:$0xff]
    %v2042 = vld [vmem:[#allocation12 + $0x90] sm:$0xff]
    %v2043 = vld [vmem:[#allocation12 + $0x98] sm:$0xff]
    %v2044 = vld [vmem:[#allocation12 + $0xa0] sm:$0xff]
    %v2045 = vld [vmem:[#allocation12 + $0xa8] sm:$0xff]
    %v2046 = vld [vmem:[#allocation12 + $0xb0] sm:$0xff]
    %v2047 = vld [vmem:[#allocation12 + $0xb8] sm:$0xff]
    %v2048 = vld [vmem:[#allocation12 + $0xc0] sm:$0xff]
    %v2049 = vld [vmem:[#allocation12 + $0xc8] sm:$0xff]
    %v2050 = vld [vmem:[#allocation12 + $0xd0] sm:$0xff]
    %v2051 = vld [vmem:[#allocation12 + $0xd8] sm:$0xff]
    %v2052 = vld [vmem:[#allocation12 + $0xe0] sm:$0xff]
    %v2053 = vld [vmem:[#allocation12 + $0xe8] sm:$0xff]
    %v2054 = vld [vmem:[#allocation12 + $0xf0] sm:$0xff]
    %v2055 = vld [vmem:[#allocation12 + $0xf8] sm:$0xff]
    %v2056 = vld [vmem:[#allocation12 + $0x100] sm:$0xff]
    %v2057 = vld [vmem:[#allocation12 + $0x108] sm:$0xff]
    %v2058 = vld [vmem:[#allocation12 + $0x110] sm:$0xff]
    %v2059 = vld [vmem:[#allocation12 + $0x118] sm:$0xff]
    %v2060 = vld [vmem:[#allocation12 + $0x120] sm:$0xff]
    %v2061 = vld [vmem:[#allocation12 + $0x128] sm:$0xff]
    %v2062 = vld [vmem:[#allocation12 + $0x130] sm:$0xff]
    %v2063 = vld [vmem:[#allocation12 + $0x138] sm:$0xff]
    %v2064 = vld [vmem:[#allocation12 + $0x140] sm:$0xff]
    %v2065 = vld [vmem:[#allocation12 + $0x148] sm:$0xff]
    %v2066 = vld [vmem:[#allocation12 + $0x150] sm:$0xff]
    %v2067 = vld [vmem:[#allocation12 + $0x158] sm:$0xff]
    %v2068 = vld [vmem:[#allocation12 + $0x160] sm:$0xff]
    %v2069 = vld [vmem:[#allocation12 + $0x168] sm:$0xff]
    %v2070 = vld [vmem:[#allocation12 + $0x170] sm:$0xff]
    %v2071 = vld [vmem:[#allocation12 + $0x178] sm:$0xff]
    %v2072 = vld [vmem:[#allocation12 + $0x180] sm:$0xff]
    %v2073 = vld [vmem:[#allocation12 + $0x188] sm:$0xff]
    %v2074 = vld [vmem:[#allocation12 + $0x190] sm:$0xff]
    %v2075 = vld [vmem:[#allocation12 + $0x198] sm:$0xff]
    %v2076 = vld [vmem:[#allocation12 + $0x1a0] sm:$0xff]
    %v2077 = vld [vmem:[#allocation12 + $0x1a8] sm:$0xff]
    %v2078 = vld [vmem:[#allocation12 + $0x1b0] sm:$0xff]
    %v2079 = vld [vmem:[#allocation12 + $0x1b8] sm:$0xff]
    %v2080 = vld [vmem:[#allocation12 + $0x1c0] sm:$0xff]
    %v2081 = vld [vmem:[#allocation12 + $0x1c8] sm:$0xff]
    %v2082 = vld [vmem:[#allocation12 + $0x1d0] sm:$0xff]
    %v2083 = vld [vmem:[#allocation12 + $0x1d8] sm:$0xff]
    %v2084 = vld [vmem:[#allocation12 + $0x1e0] sm:$0xff]
    %v2085 = vld [vmem:[#allocation12 + $0x1e8] sm:$0xff]
    %v2086 = vld [vmem:[#allocation12 + $0x1f0] sm:$0xff]
    %v2087 = vld [vmem:[#allocation12 + $0x1f8] sm:$0xff]
    %v2088 = vld [vmem:[#allocation12 + $0x200] sm:$0xff]
    %v2089 = vld [vmem:[#allocation12 + $0x208] sm:$0xff]
    %v2090 = vld [vmem:[#allocation12 + $0x210] sm:$0xff]
    %v2091 = vld [vmem:[#allocation12 + $0x218] sm:$0xff]
    %v2092 = vld [vmem:[#allocation12 + $0x220] sm:$0xff]
    %v2093 = vld [vmem:[#allocation12 + $0x228] sm:$0xff]
    %v2094 = vld [vmem:[#allocation12 + $0x230] sm:$0xff]
    %v2095 = vld [vmem:[#allocation12 + $0x238] sm:$0xff]
    %v2096 = vld [vmem:[#allocation12 + $0x240] sm:$0xff]
    %v2097 = vld [vmem:[#allocation12 + $0x248] sm:$0xff]
    %v2098 = vld [vmem:[#allocation12 + $0x250] sm:$0xff]
    %v2099 = vld [vmem:[#allocation12 + $0x258] sm:$0xff]
    %v2100 = vld [vmem:[#allocation12 + $0x260] sm:$0xff]
    %v2101 = vld [vmem:[#allocation12 + $0x268] sm:$0xff]
    %v2102 = vld [vmem:[#allocation12 + $0x270] sm:$0xff]
    %v2103 = vld [vmem:[#allocation12 + $0x278] sm:$0xff]
    %v2104 = vld [vmem:[#allocation12 + $0x280] sm:$0xff]
    %v2105 = vld [vmem:[#allocation12 + $0x288] sm:$0xff]
    %v2106 = vld [vmem:[#allocation12 + $0x290] sm:$0xff]
    %v2107 = vld [vmem:[#allocation12 + $0x298] sm:$0xff]
    %v2108 = vld [vmem:[#allocation12 + $0x2a0] sm:$0xff]
    %v2109 = vld [vmem:[#allocation12 + $0x2a8] sm:$0xff]
    %v2110 = vld [vmem:[#allocation12 + $0x2b0] sm:$0xff]
    %v2111 = vld [vmem:[#allocation12 + $0x2b8] sm:$0xff]
    %v2112 = vld [vmem:[#allocation12 + $0x2c0] sm:$0xff]
    %v2113 = vld [vmem:[#allocation12 + $0x2c8] sm:$0xff]
    %v2114 = vld [vmem:[#allocation12 + $0x2d0] sm:$0xff]
    %v2115 = vld [vmem:[#allocation12 + $0x2d8] sm:$0xff]
    %v2116 = vld [vmem:[#allocation12 + $0x2e0] sm:$0xff]
    %v2117 = vld [vmem:[#allocation12 + $0x2e8] sm:$0xff]
    %v2118 = vld [vmem:[#allocation12 + $0x2f0] sm:$0xff]
    %v2119 = vld [vmem:[#allocation12 + $0x2f8] sm:$0xff]
    %v2120 = vld [vmem:[#allocation12 + $0x300] sm:$0xff]
    %v2121 = vld [vmem:[#allocation12 + $0x308] sm:$0xff]
    %v2122 = vld [vmem:[#allocation12 + $0x310] sm:$0xff]
    %v2123 = vld [vmem:[#allocation12 + $0x318] sm:$0xff]
    %v2124 = vld [vmem:[#allocation12 + $0x320] sm:$0xff]
    %v2125 = vld [vmem:[#allocation12 + $0x328] sm:$0xff]
    %v2126 = vld [vmem:[#allocation12 + $0x330] sm:$0xff]
    %v2127 = vld [vmem:[#allocation12 + $0x338] sm:$0xff]
    %v2128 = vld [vmem:[#allocation12 + $0x340] sm:$0xff]
    %v2129 = vld [vmem:[#allocation12 + $0x348] sm:$0xff]
    %v2130 = vld [vmem:[#allocation12 + $0x350] sm:$0xff]
    %v2131 = vld [vmem:[#allocation12 + $0x358] sm:$0xff]
    %v2132 = vld [vmem:[#allocation12 + $0x360] sm:$0xff]
    %v2133 = vld [vmem:[#allocation12 + $0x368] sm:$0xff]
    %v2134 = vld [vmem:[#allocation12 + $0x370] sm:$0xff]
    %v2135 = vld [vmem:[#allocation12 + $0x378] sm:$0xff]
    %v2136 = vld [vmem:[#allocation12 + $0x380] sm:$0xff]
    %v2137 = vld [vmem:[#allocation12 + $0x388] sm:$0xff]
    %v2138 = vld [vmem:[#allocation12 + $0x390] sm:$0xff]
    %v2139 = vld [vmem:[#allocation12 + $0x398] sm:$0xff]
    %v2140 = vld [vmem:[#allocation12 + $0x3a0] sm:$0xff]
    %v2141 = vld [vmem:[#allocation12 + $0x3a8] sm:$0xff]
    %v2142 = vld [vmem:[#allocation12 + $0x3b0] sm:$0xff]
    %v2143 = vld [vmem:[#allocation12 + $0x3b8] sm:$0xff]
    %v2144 = vld [vmem:[#allocation12 + $0x3c0] sm:$0xff]
    %v2145 = vld [vmem:[#allocation12 + $0x3c8] sm:$0xff]
    %v2146 = vld [vmem:[#allocation12 + $0x3d0] sm:$0xff]
    %v2147 = vld [vmem:[#allocation12 + $0x3d8] sm:$0xff]
    %v2148 = vld [vmem:[#allocation12 + $0x3e0] sm:$0xff]
    %v2149 = vld [vmem:[#allocation12 + $0x3e8] sm:$0xff]
    %v2150 = vld [vmem:[#allocation12 + $0x3f0] sm:$0xff]
    %v2151 = vld [vmem:[#allocation12 + $0x3f8] sm:$0xff]
    %v2152 = vld [vmem:[#allocation12 + $0x400] sm:$0xff]
    %v2153 = vld [vmem:[#allocation12 + $0x408] sm:$0xff]
    %v2154 = vld [vmem:[#allocation12 + $0x410] sm:$0xff]
    %v2155 = vld [vmem:[#allocation12 + $0x418] sm:$0xff]
    %v2156 = vld [vmem:[#allocation12 + $0x420] sm:$0xff]
    %v2157 = vld [vmem:[#allocation12 + $0x428] sm:$0xff]
    %v2158 = vld [vmem:[#allocation12 + $0x430] sm:$0xff]
    %v2159 = vld [vmem:[#allocation12 + $0x438] sm:$0xff]
    %v2160 = vld [vmem:[#allocation12 + $0x440] sm:$0xff]
    %v2161 = vld [vmem:[#allocation12 + $0x448] sm:$0xff]
    %v2162 = vld [vmem:[#allocation12 + $0x450] sm:$0xff]
    %v2163 = vld [vmem:[#allocation12 + $0x458] sm:$0xff]
    %v2164 = vld [vmem:[#allocation12 + $0x460] sm:$0xff]
    %v2165 = vld [vmem:[#allocation12 + $0x468] sm:$0xff]
    %v2166 = vld [vmem:[#allocation12 + $0x470] sm:$0xff]
    %v2167 = vld [vmem:[#allocation12 + $0x478] sm:$0xff]
    %v2168 = vld [vmem:[#allocation12 + $0x480] sm:$0xff]
    %v2169 = vld [vmem:[#allocation12 + $0x488] sm:$0xff]
    %v2170 = vld [vmem:[#allocation12 + $0x490] sm:$0xff]
    %v2171 = vld [vmem:[#allocation12 + $0x498] sm:$0xff]
    %v2172 = vld [vmem:[#allocation12 + $0x4a0] sm:$0xff]
    %v2173 = vld [vmem:[#allocation12 + $0x4a8] sm:$0xff]
    %v2174 = vld [vmem:[#allocation12 + $0x4b0] sm:$0xff]
    %v2175 = vld [vmem:[#allocation12 + $0x4b8] sm:$0xff]
    %v2176 = vld [vmem:[#allocation12 + $0x4c0] sm:$0xff]
    %v2177 = vld [vmem:[#allocation12 + $0x4c8] sm:$0xff]
    %v2178 = vld [vmem:[#allocation12 + $0x4d0] sm:$0xff]
    %v2179 = vld [vmem:[#allocation12 + $0x4d8] sm:$0xff]
    %v2180 = vld [vmem:[#allocation12 + $0x4e0] sm:$0xff]
    %v2181 = vld [vmem:[#allocation12 + $0x4e8] sm:$0xff]
    %v2182 = vld [vmem:[#allocation12 + $0x4f0] sm:$0xff]
    %v2183 = vld [vmem:[#allocation12 + $0x4f8] sm:$0xff]
    %2184 = vmatpush.msra.mxu0 %v2054
    %2185 = vmatpush.msra.mxu0 %v2052
    %2186 = vmatpush.msra.mxu0 %v2050
    %2187 = vmatpush.msra.mxu0 %v2048
    %2188 = vmatpush.msra.mxu0 %v2046
    %2189 = vmatpush.msra.mxu0 %v2044
    %2190 = vmatpush.msra.mxu0 %v2042
    %2191 = vmatpush.msra.mxu0 %v2040
    %2192 = vmatpush.msra.mxu0 %v2038
    %2193 = vmatpush.msra.mxu0 %v2036
    %2194 = vmatpush.msra.mxu0 %v2034
    %2195 = vmatpush.msra.mxu0 %v2032
    %2196 = vmatpush.msra.mxu0 %v2030
    %2197 = vmatpush.msra.mxu0 %v2028
    %2198 = vmatpush.msra.mxu0 %v2026
    %2199 = vmatpush.msra.mxu0 %v2024
    %2200 = vmatmul.f32.gmra.mxu0 %v2019
    %v2201 = vpop.f32.mrf.mxu0
    %v2202 = vadd.f32 0.0, %v2201
    %2203 = vdwg.mxu0
    %2204 = vmatpush.msra.mxu0 %v2086
    %2205 = vmatpush.msra.mxu0 %v2084
    %2206 = vmatpush.msra.mxu0 %v2082
    %2207 = vmatpush.msra.mxu0 %v2080
    %2208 = vmatpush.msra.mxu0 %v2078
    %2209 = vmatpush.msra.mxu0 %v2076
    %2210 = vmatpush.msra.mxu0 %v2074
    %2211 = vmatpush.msra.mxu0 %v2072
    %2212 = vmatpush.msra.mxu0 %v2070
    %2213 = vmatpush.msra.mxu0 %v2068
    %2214 = vmatpush.msra.mxu0 %v2066
    %2215 = vmatpush.msra.mxu0 %v2064
    %2216 = vmatpush.msra.mxu0 %v2062
    %2217 = vmatpush.msra.mxu0 %v2060
    %2218 = vmatpush.msra.mxu0 %v2058
    %2219 = vmatpush.msra.mxu0 %v2056
    %2220 = vmatmul.f32.gmra.mxu0 %v2020
    %v2221 = vpop.f32.mrf.mxu0
    %v2222 = vadd.f32 %v2202, %v2221
    %2223 = vdwg.mxu0
    %2224 = vmatpush.msra.mxu0 %v2118
    %2225 = vmatpush.msra.mxu0 %v2116
    %2226 = vmatpush.msra.mxu0 %v2114
    %2227 = vmatpush.msra.mxu0 %v2112
    %2228 = vmatpush.msra.mxu0 %v2110
    %2229 = vmatpush.msra.mxu0 %v2108
    %2230 = vmatpush.msra.mxu0 %v2106
    %2231 = vmatpush.msra.mxu0 %v2104
    %2232 = vmatpush.msra.mxu0 %v2102
    %2233 = vmatpush.msra.mxu0 %v2100
    %2234 = vmatpush.msra.mxu0 %v2098
    %2235 = vmatpush.msra.mxu0 %v2096
    %2236 = vmatpush.msra.mxu0 %v2094
    %2237 = vmatpush.msra.mxu0 %v2092
    %2238 = vmatpush.msra.mxu0 %v2090
    %2239 = vmatpush.msra.mxu0 %v2088
    %2240 = vmatmul.f32.gmra.mxu0 %v2021
    %v2241 = vpop.f32.mrf.mxu0
    %v2242 = vadd.f32 %v2222, %v2241
    %2243 = vdwg.mxu0
    %2244 = vmatpush.msra.mxu0 %v2150
    %2245 = vmatpush.msra.mxu0 %v2148
    %2246 = vmatpush.msra.mxu0 %v2146
    %2247 = vmatpush.msra.mxu0 %v2144
    %2248 = vmatpush.msra.mxu0 %v2142
    %2249 = vmatpush.msra.mxu0 %v2140
    %2250 = vmatpush.msra.mxu0 %v2138
    %2251 = vmatpush.msra.mxu0 %v2136
    %2252 = vmatpush.msra.mxu0 %v2134
    %2253 = vmatpush.msra.mxu0 %v2132
    %2254 = vmatpush.msra.mxu0 %v2130
    %2255 = vmatpush.msra.mxu0 %v2128
    %2256 = vmatpush.msra.mxu0 %v2126
    %2257 = vmatpush.msra.mxu0 %v2124
    %2258 = vmatpush.msra.mxu0 %v2122
    %2259 = vmatpush.msra.mxu0 %v2120
    %2260 = vmatmul.f32.gmra.mxu0 %v2022
    %v2261 = vpop.f32.mrf.mxu0
    %v2262 = vadd.f32 %v2242, %v2261
    %2263 = vdwg.mxu0
    %2264 = vmatpush.msra.mxu0 %v2182
    %2265 = vmatpush.msra.mxu0 %v2180
    %2266 = vmatpush.msra.mxu0 %v2178
    %2267 = vmatpush.msra.mxu0 %v2176
    %2268 = vmatpush.msra.mxu0 %v2174
    %2269 = vmatpush.msra.mxu0 %v2172
    %2270 = vmatpush.msra.mxu0 %v2170
    %2271 = vmatpush.msra.mxu0 %v2168
    %2272 = vmatpush.msra.mxu0 %v2166
    %2273 = vmatpush.msra.mxu0 %v2164
    %2274 = vmatpush.msra.mxu0 %v2162
    %2275 = vmatpush.msra.mxu0 %v2160
    %2276 = vmatpush.msra.mxu0 %v2158
    %2277 = vmatpush.msra.mxu0 %v2156
    %2278 = vmatpush.msra.mxu0 %v2154
    %2279 = vmatpush.msra.mxu0 %v2152
    %2280 = vmatmul.f32.gmra.mxu0 %v2023
    %v2281 = vpop.f32.mrf.mxu0
    %v2282 = vadd.f32 %v2262, %v2281
    %2283 = vdwg.mxu0
    %2284 = vmatpush.msra.mxu0 %v2055
    %2285 = vmatpush.msra.mxu0 %v2053
    %2286 = vmatpush.msra.mxu0 %v2051
    %2287 = vmatpush.msra.mxu0 %v2049
    %2288 = vmatpush.msra.mxu0 %v2047
    %2289 = vmatpush.msra.mxu0 %v2045
    %2290 = vmatpush.msra.mxu0 %v2043
    %2291 = vmatpush.msra.mxu0 %v2041
    %2292 = vmatpush.msra.mxu0 %v2039
    %2293 = vmatpush.msra.mxu0 %v2037
    %2294 = vmatpush.msra.mxu0 %v2035
    %2295 = vmatpush.msra.mxu0 %v2033
    %2296 = vmatpush.msra.mxu0 %v2031
    %2297 = vmatpush.msra.mxu0 %v2029
    %2298 = vmatpush.msra.mxu0 %v2027
    %2299 = vmatpush.msra.mxu0 %v2025
    %2300 = vmatmul.f32.gmra.mxu0 %v2019
    %v2301 = vpop.f32.mrf.mxu0
    %v2302 = vadd.f32 0.0, %v2301
    %2303 = vdwg.mxu0
    %2304 = vmatpush.msra.mxu0 %v2087
    %2305 = vmatpush.msra.mxu0 %v2085
    %2306 = vmatpush.msra.mxu0 %v2083
    %2307 = vmatpush.msra.mxu0 %v2081
    %2308 = vmatpush.msra.mxu0 %v2079
    %2309 = vmatpush.msra.mxu0 %v2077
    %2310 = vmatpush.msra.mxu0 %v2075
    %2311 = vmatpush.msra.mxu0 %v2073
    %2312 = vmatpush.msra.mxu0 %v2071
    %2313 = vmatpush.msra.mxu0 %v2069
    %2314 = vmatpush.msra.mxu0 %v2067
    %2315 = vmatpush.msra.mxu0 %v2065
    %2316 = vmatpush.msra.mxu0 %v2063
    %2317 = vmatpush.msra.mxu0 %v2061
    %2318 = vmatpush.msra.mxu0 %v2059
    %2319 = vmatpush.msra.mxu0 %v2057
    %2320 = vmatmul.f32.gmra.mxu0 %v2020
    %v2321 = vpop.f32.mrf.mxu0
    %v2322 = vadd.f32 %v2302, %v2321
    %2323 = vdwg.mxu0
    %2324 = vmatpush.msra.mxu0 %v2119
    %2325 = vmatpush.msra.mxu0 %v2117
    %2326 = vmatpush.msra.mxu0 %v2115
    %2327 = vmatpush.msra.mxu0 %v2113
    %2328 = vmatpush.msra.mxu0 %v2111
    %2329 = vmatpush.msra.mxu0 %v2109
    %2330 = vmatpush.msra.mxu0 %v2107
    %2331 = vmatpush.msra.mxu0 %v2105
    %2332 = vmatpush.msra.mxu0 %v2103
    %2333 = vmatpush.msra.mxu0 %v2101
    %2334 = vmatpush.msra.mxu0 %v2099
    %2335 = vmatpush.msra.mxu0 %v2097
    %2336 = vmatpush.msra.mxu0 %v2095
    %2337 = vmatpush.msra.mxu0 %v2093
    %2338 = vmatpush.msra.mxu0 %v2091
    %2339 = vmatpush.msra.mxu0 %v2089
    %2340 = vmatmul.f32.gmra.mxu0 %v2021
    %v2341 = vpop.f32.mrf.mxu0
    %v2342 = vadd.f32 %v2322, %v2341
    %2343 = vdwg.mxu0
    %2344 = vmatpush.msra.mxu0 %v2151
    %2345 = vmatpush.msra.mxu0 %v2149
    %2346 = vmatpush.msra.mxu0 %v2147
    %2347 = vmatpush.msra.mxu0 %v2145
    %2348 = vmatpush.msra.mxu0 %v2143
    %2349 = vmatpush.msra.mxu0 %v2141
    %2350 = vmatpush.msra.mxu0 %v2139
    %2351 = vmatpush.msra.mxu0 %v2137
    %2352 = vmatpush.msra.mxu0 %v2135
    %2353 = vmatpush.msra.mxu0 %v2133
    %2354 = vmatpush.msra.mxu0 %v2131
    %2355 = vmatpush.msra.mxu0 %v2129
    %2356 = vmatpush.msra.mxu0 %v2127
    %2357 = vmatpush.msra.mxu0 %v2125
    %2358 = vmatpush.msra.mxu0 %v2123
    %2359 = vmatpush.msra.mxu0 %v2121
    %2360 = vmatmul.f32.gmra.mxu0 %v2022
    %v2361 = vpop.f32.mrf.mxu0
    %v2362 = vadd.f32 %v2342, %v2361
    %2363 = vdwg.mxu0
    %2364 = vmatpush.msra.mxu0 %v2183
    %2365 = vmatpush.msra.mxu0 %v2181
    %2366 = vmatpush.msra.mxu0 %v2179
    %2367 = vmatpush.msra.mxu0 %v2177
    %2368 = vmatpush.msra.mxu0 %v2175
    %2369 = vmatpush.msra.mxu0 %v2173
    %2370 = vmatpush.msra.mxu0 %v2171
    %2371 = vmatpush.msra.mxu0 %v2169
    %2372 = vmatpush.msra.mxu0 %v2167
    %2373 = vmatpush.msra.mxu0 %v2165
    %2374 = vmatpush.msra.mxu0 %v2163
    %2375 = vmatpush.msra.mxu0 %v2161
    %2376 = vmatpush.msra.mxu0 %v2159
    %2377 = vmatpush.msra.mxu0 %v2157
    %2378 = vmatpush.msra.mxu0 %v2155
    %2379 = vmatpush.msra.mxu0 %v2153
    %2380 = vmatmul.f32.gmra.mxu0 %v2023
    %v2381 = vpop.f32.mrf.mxu0
    %v2382 = vadd.f32 %v2362, %v2381
    %2383 = vdwg.mxu0
    %2384 = vst [vmem:[#allocation13] sm:$0xff] %v2282
    %2385 = vst [vmem:[#allocation13 + $0x8] sm:$0xff] %v2382
    // Predicated region
    $region46: #{tpu_custom_call.1} parent=1 // pred_check
      _
    $region47: #{tpu_custom_call.1} parent=1 // pred_check_branch
      %2387 = sbr.rel (0) target = $region49
    $region48: #{tpu_custom_call.1} parent=1 // pred_region
      %2389 = vsyncadd [#allocation6], 0
      %s2391 = sshll.u32 [#allocation13], 4
      %s2392 = int_to_ptr.vmem [resolvable:$true] %s2391
      %s2393 = sshll.u32 %s7, 4
      %s2394 = int_to_ptr.hbm [resolvable:$true] %s2393
      %2396 = dma.vmem_to_hbm [thread:$0]  %s2392, 256, %s2394, [#allocation6]
    $region49: #{tpu_custom_call.1} parent=1 // pred_fallthru
      _
    // Predicated region
    $region50: #{tpu_custom_call.1} parent=1 // pred_check
      _
    $region51: #{tpu_custom_call.1} parent=1 // pred_check_branch
      %2398 = sbr.rel (0) target = $region53
    $region52: #{tpu_custom_call.1} parent=1 // pred_region
      %2400 = dma.done [#allocation6], 256
    $region53: #{tpu_custom_call.1} parent=1 // pred_fallthru
      _
    %2401 = vsyncpa [#allocation5], 1
    %2402 = vsyncpa [#allocation8], 1
    %2403 = vsyncpa [#allocation11], 1
    %2404 = vsyncpa [#allocation6], 1

</llo_original>
